<compile_context>
chip_gen: v7x
topology: tpu7x:2x2x1
jax: 0.10.0
libtpu: 0.0.40
codegen_flags: <defaults>
</compile_context>

<pallas_src>
import math
from functools import partial

import jax
import jax.numpy as jnp
from jax.experimental import pallas as pl
from jax.experimental.pallas import tpu as pltpu

PAD = 0
LN_EPS = 1e-5

# bf16 operands feed the MXU at full rate on v5e/v6e/v7x; accumulation stays f32 via
# preferred_element_type.  Set both to jnp.float32 for exact parity with the PyTorch
# reference during validation.
MXU_DTYPE = jnp.bfloat16          # matmul operand / weight storage dtype
ACT_DTYPE = jnp.bfloat16          # inter-kernel activation dtype (HBM round trips)

VMEM_LIMIT = 64 * 1024 * 1024     # raise v5e's 16 MiB default; <= physical on all gens


# --------------------------- tile-size helpers -------------------------------------

def _pick_row_tile(m, target=512):
    """Largest multiple-of-8 divisor of m that is <= target, else the full dim."""
    if m <= target:
        return m
    start = target - (target % 8)
    for t in range(start, 7, -8):
        if m % t == 0:
            return t
    return m


def _pick_vocab_tile(v, target=2048):
    """Multiple-of-128 divisor of v <= target (lane-dense tiles), else the full dim."""
    if v <= target or v % 128 != 0:
        return v
    start = target - (target % 128)
    for t in range(start, 127, -128):
        if v % t == 0:
            return t
    return v


def _ln(y, g, b):
    mu = jnp.mean(y, axis=-1, keepdims=True)
    yc = y - mu
    var = jnp.mean(yc * yc, axis=-1, keepdims=True)
    return yc * jax.lax.rsqrt(var + LN_EPS) * g + b


# --------------------------- fused attention block ---------------------------------
# grid = (B,)  -- each step handles one sequence's [T, D] slab; "parallel" so v7x's
# two TensorCores split the batch.  Causal mask is generated in-kernel from iota
# (no [B,1,T,T] mask DMA).  QKV is a single fused matmul (1/sqrt(dh) pre-baked into
# the Q weight columns); per-head contexts are concatenated and the out-projection is
# a single [T,D]@[D,D] matmul; residual + post-LN run in the epilogue.

def _attn_block_kernel(x_ref, wqkv_ref, bqkv_ref, wo_ref, bo_ref, g_ref, be_ref, o_ref,
                       *, n_heads, mxu_dtype):
    x = x_ref[...]                                   # [T, D] bf16
    T, D = x.shape
    dh = D // n_heads
    xf = x.astype(jnp.float32)

    qkv = jnp.dot(x.astype(mxu_dtype), wqkv_ref[...],
                  preferred_element_type=jnp.float32) + bqkv_ref[...]      # [T, 3D] f32

    row = jax.lax.broadcasted_iota(jnp.int32, (T, T), 0)
    col = jax.lax.broadcasted_iota(jnp.int32, (T, T), 1)
    causal = row >= col

    # TODO(synk): for T >~ 1k switch to a flash-tiled (q_tile, kv_tile) grid with online
    # softmax; dense per-head [T,T] scores are fine at ASR-LM sequence lengths.
    # TODO(synk): when dh < 128, head slices start mid-vreg; a grouped-head einsum
    # (pairs of heads per 128-lane slice) would remove the per-head lane shuffles.
    ctx_heads = []
    for h in range(n_heads):
        qh = qkv[:, h * dh:(h + 1) * dh]
        kh = qkv[:, D + h * dh:D + (h + 1) * dh]
        vh = qkv[:, 2 * D + h * dh:2 * D + (h + 1) * dh]
        s = jax.lax.dot_general(qh.astype(mxu_dtype), kh.astype(mxu_dtype),
                                (((1,), (1,)), ((), ())),
                                preferred_element_type=jnp.float32)        # [T, T] f32
        s = jnp.where(causal, s, -1e30)                                    # mask in f32
        s = s - jnp.max(s, axis=-1, keepdims=True)
        p = jnp.exp(s)
        p = p * pl.reciprocal(jnp.sum(p, axis=-1, keepdims=True), approx=True)
        ctx_heads.append(jnp.dot(p.astype(mxu_dtype), vh.astype(mxu_dtype),
                                 preferred_element_type=jnp.float32))      # [T, dh]

    ctx = jnp.concatenate(ctx_heads, axis=-1)                              # [T, D] f32
    attn = jnp.dot(ctx.astype(mxu_dtype), wo_ref[...],
                   preferred_element_type=jnp.float32) + bo_ref[...]       # one K=D matmul

    y = xf + attn                                        # residual add (dropout = 0)
    o_ref[...] = _ln(y, g_ref[...], be_ref[...]).astype(o_ref.dtype)       # post-LN


def attention_block(x2d, p, B, T, D, H):
    assert B == 1 or T % 8 == 0, "per-sequence block needs T to be a multiple of 8"
    return pl.pallas_call(
        partial(_attn_block_kernel, n_heads=H, mxu_dtype=MXU_DTYPE),
        out_shape=jax.ShapeDtypeStruct((B * T, D), ACT_DTYPE),
        grid=(B,),
        in_specs=[
            pl.BlockSpec((T, D), lambda b: (b, 0)),
            pl.BlockSpec((D, 3 * D), lambda b: (0, 0)),
            pl.BlockSpec((1, 3 * D), lambda b: (0, 0)),
            pl.BlockSpec((D, D), lambda b: (0, 0)),
            pl.BlockSpec((1, D), lambda b: (0, 0)),
            pl.BlockSpec((1, D), lambda b: (0, 0)),
            pl.BlockSpec((1, D), lambda b: (0, 0)),
        ],
        out_specs=pl.BlockSpec((T, D), lambda b: (b, 0)),
        compiler_params=pltpu.CompilerParams(
            dimension_semantics=("parallel",), vmem_limit_bytes=VMEM_LIMIT),
    )(x2d, p["wqkv"], p["bqkv"], p["wo"], p["bo"], p["ln1_g"], p["ln1_b"])


# --------------------------- fused GLU-FFN block ------------------------------------
# grid over row tiles of [B*T, D]; one [D, 2F] matmul, value/gate split in-kernel,
# second matmul, residual add + post-LN epilogue.  Weights stay VMEM-resident across
# the grid (constant block index -> no re-DMA); bf16 halves their footprint.

def _ffn_block_kernel(x_ref, w1_ref, b1_ref, w2_ref, b2_ref, g_ref, be_ref, o_ref,
                      *, d_ff, mxu_dtype):
    x = x_ref[...]                                                      # [TM, D] bf16
    xf = x.astype(jnp.float32)
    h = jnp.dot(x.astype(mxu_dtype), w1_ref[...],
                preferred_element_type=jnp.float32) + b1_ref[...]       # [TM, 2F] f32
    a = h[:, :d_ff]
    gate = h[:, d_ff:]
    act = a * jax.nn.sigmoid(gate)                                      # F.glu, f32 VPU/EUP
    ff = jnp.dot(act.astype(mxu_dtype), w2_ref[...],
                 preferred_element_type=jnp.float32) + b2_ref[...]      # [TM, D] f32
    y = xf + ff                                                         # residual (dropout 0)
    o_ref[...] = _ln(y, g_ref[...], be_ref[...]).astype(o_ref.dtype)    # post-LayerNorm


def ffn_block(x2d, p, d_ff):
    M, D = x2d.shape
    TM = _pick_row_tile(M, 512)
    return pl.pallas_call(
        partial(_ffn_block_kernel, d_ff=d_ff, mxu_dtype=MXU_DTYPE),
        out_shape=jax.ShapeDtypeStruct((M, D), ACT_DTYPE),
        grid=(M // TM,),
        in_specs=[
            pl.BlockSpec((TM, D), lambda i: (i, 0)),
            pl.BlockSpec((D, 2 * d_ff), lambda i: (0, 0)),
            pl.BlockSpec((1, 2 * d_ff), lambda i: (0, 0)),
            pl.BlockSpec((d_ff, D), lambda i: (0, 0)),
            pl.BlockSpec((1, D), lambda i: (0, 0)),
            pl.BlockSpec((1, D), lambda i: (0, 0)),
            pl.BlockSpec((1, D), lambda i: (0, 0)),
        ],
        out_specs=pl.BlockSpec((TM, D), lambda i: (i, 0)),
        compiler_params=pltpu.CompilerParams(
            dimension_semantics=("parallel",), vmem_limit_bytes=VMEM_LIMIT),
    )(x2d, p["w1"], p["b1"], p["w2"], p["b2"], p["ln2_g"], p["ln2_b"])


# -------------------- fused output head + label-smoothing loss ----------------------
# grid = (row tiles [parallel], vocab tiles [arbitrary reduction]).  Logits tiles are
# produced by a transposed-RHS matmul against the tied bf16 [V, D] embedding (no
# transpose of the embedding per step), consumed on the fly by an online logsumexp +
# analytic KL, and never written to HBM.  Per-row loss:
#   const - confidence*logp[target] - low*(sum_logp - logp[target]),
# const = confidence*log(confidence) + (V-1)*low*log(low), rows with target==PAD -> 0.

def _head_loss_kernel(x_ref, w_ref, b_ref, t_ref, o_ref,
                      mmax, sexp, slog, stgt,
                      *, vocab, v_tile, confidence, low, const_term, mxu_dtype):
    v_i = pl.program_id(1)
    n_v = pl.num_programs(1)

    @pl.when(v_i == 0)
    def _():
        mmax[...] = jnp.full_like(mmax, -1e30)
        sexp[...] = jnp.zeros_like(sexp)
        slog[...] = jnp.zeros_like(slog)
        stgt[...] = jnp.zeros_like(stgt)

    logits = jax.lax.dot_general(
        x_ref[...].astype(mxu_dtype), w_ref[...],
        (((1,), (1,)), ((), ())),
        preferred_element_type=jnp.float32) + b_ref[...]                # [TM, TV] f32

    t = t_ref[...]                                                      # [TM, 1] int32

    # online logsumexp over vocab tiles (f32)
    m_old = mmax[...]
    m_new = jnp.maximum(m_old, jnp.max(logits, axis=-1, keepdims=True))
    sexp[...] = (sexp[...] * jnp.exp(m_old - m_new)
                 + jnp.sum(jnp.exp(logits - m_new), axis=-1, keepdims=True))
    mmax[...] = m_new
    slog[...] = slog[...] + jnp.sum(logits, axis=-1, keepdims=True)

    # gather the target logit if its column lives in this vocab tile
    # (iota is un-offset; the grid offset is folded into the [TM,1] target instead)
    cols = jax.lax.broadcasted_iota(jnp.int32, logits.shape, 1)
    t_local = t - v_i * v_tile
    stgt[...] = stgt[...] + jnp.sum(jnp.where(cols == t_local, logits, 0.0),
                                    axis=-1, keepdims=True)

    @pl.when(v_i == n_v - 1)
    def _():
        lse = mmax[...] + jnp.log(sexp[...])
        logp_t = stgt[...] - lse
        sum_logp = slog[...] - float(vocab) * lse
        loss = const_term - confidence * logp_t - low * (sum_logp - logp_t)
        o_ref[...] = jnp.where(t == PAD, 0.0, loss)                     # ignore PAD rows


def head_and_loss(x2d, w_vd, b_1v, targets_m1, vocab, smoothing, denom):
    M, D = x2d.shape
    TM = _pick_row_tile(M, 512)          # larger row tile -> fewer re-streams of [V,D]
    TV = _pick_vocab_tile(vocab, 2048)

    confidence = 1.0 - smoothing
    low = smoothing / (vocab - 1) if vocab > 1 else 0.0
    const_term = 0.0
    if confidence > 0.0:
        const_term += confidence * math.log(confidence)
    if low > 0.0:
        const_term += (vocab - 1) * low * math.log(low)

    row_loss = pl.pallas_call(
        partial(_head_loss_kernel, vocab=vocab, v_tile=TV, confidence=confidence,
                low=low, const_term=const_term, mxu_dtype=MXU_DTYPE),
        out_shape=jax.ShapeDtypeStruct((M, 1), jnp.float32),
        grid=(M // TM, pl.cdiv(vocab, TV)),
        in_specs=[
            pl.BlockSpec((TM, D), lambda m, v: (m, 0)),
            pl.BlockSpec((TV, D), lambda m, v: (v, 0)),     # tied bf16 embedding, no transpose
            pl.BlockSpec((1, TV), lambda m, v: (0, v)),
            pl.BlockSpec((TM, 1), lambda m, v: (m, 0)),
        ],
        out_specs=pl.BlockSpec((TM, 1), lambda m, v: (m, 0)),
        scratch_shapes=[pltpu.VMEM((TM, 1), jnp.float32)] * 4,
        compiler_params=pltpu.CompilerParams(
            dimension_semantics=("parallel", "arbitrary"),
            vmem_limit_bytes=VMEM_LIMIT),
    )(x2d, w_vd, b_1v, targets_m1)
    return jnp.sum(row_loss) / denom


# ----------------------------- model glue -------------------------------------------

def positional_encoding(length, d_model):
    pos = jnp.arange(length, dtype=jnp.float32)[:, None]
    div = jnp.exp(jnp.arange(0, d_model, 2, dtype=jnp.float32)
                  * (-math.log(10000.0) / d_model))
    pe = jnp.zeros((length, d_model), jnp.float32)
    pe = pe.at[:, 0::2].set(jnp.sin(pos * div))
    pe = pe.at[:, 1::2].set(jnp.cos(pos * div))
    return pe


def forward(params, cfg, inputs, targets):
    B, T = inputs.shape
    D = cfg["d_model"]
    V = cfg["vocab_size"]
    H = cfg["n_heads"]

    # TODO(synk): embedding gather + sqrt(D)*x + PE kept as plain-JAX glue (XLA fuses
    # the gather with the elementwise prologue); a pl.Element-gather kernel could fold
    # this into the first attention block.
    x = jnp.take(params["embedding"], inputs, axis=0).astype(jnp.float32)   # [B, T, D]
    x = x * math.sqrt(D) + positional_encoding(T, D)[None]
    x = x.reshape(B * T, D).astype(ACT_DTYPE)          # lane-dense bf16 [M, D]

    for blk in params["blocks"]:
        x = attention_block(x, blk, B, T, D, H)        # 1 fused kernel
        x = ffn_block(x, blk, cfg["ffn_units"])        # 1 fused kernel

    return head_and_loss(x, params["out_w"], params["out_b"],
                         targets.reshape(B * T, 1).astype(jnp.int32),
                         V, cfg["smoothing"], float(B))


def init_params(key, cfg):
    D, V, F = cfg["d_model"], cfg["vocab_size"], cfg["ffn_units"]
    H = cfg["n_heads"]
    n = cfg["num_blocks"]
    keys = jax.random.split(key, 4 * n + 2)
    ki = iter(range(len(keys)))

    def w(shape):
        return jax.random.normal(keys[next(ki)], shape, jnp.float32) * 0.02

    # Weights are stored pre-transposed / pre-fused ([K, N] layouts) and cast to bf16
    # so the forward pass never emits an XLA transpose and feeds bf16 MXU operands.
    scale = 1.0 / math.sqrt(D // H)                    # baked into the Q columns of wqkv
    params = {"embedding": w((V, D)).astype(MXU_DTYPE)}
    blocks = []
    for _ in range(n):
        wqkv = w((D, 3 * D))
        wqkv = wqkv.at[:, :D].multiply(scale)          # fold 1/sqrt(dh) into Q weights
        blocks.append({
            "wqkv": wqkv.astype(MXU_DTYPE), "bqkv": jnp.zeros((1, 3 * D), jnp.float32),
            "wo": w((D, D)).astype(MXU_DTYPE), "bo": jnp.zeros((1, D), jnp.float32),
            "ln1_g": jnp.ones((1, D), jnp.float32), "ln1_b": jnp.zeros((1, D), jnp.float32),
            "w1": w((D, 2 * F)).astype(MXU_DTYPE), "b1": jnp.zeros((1, 2 * F), jnp.float32),
            "w2": w((F, D)).astype(MXU_DTYPE), "b2": jnp.zeros((1, D), jnp.float32),
            "ln2_g": jnp.ones((1, D), jnp.float32), "ln2_b": jnp.zeros((1, D), jnp.float32),
        })
    params["blocks"] = blocks
    if cfg["share_embedding"]:
        params["out_w"] = params["embedding"]          # weight tying, consumed as bf16 [V, D]
    else:
        params["out_w"] = w((V, D)).astype(MXU_DTYPE)
    params["out_b"] = jnp.zeros((1, V), jnp.float32)
    return params


if __name__ == "__main__":
    cfg = dict(
        vocab_size=50,
        d_model=32,
        n_heads=4,
        ffn_units=64,
        num_blocks=2,
        residual_dropout_rate=0.0,
        smoothing=0.1,
        share_embedding=True,
    )
    B, T = 2, 8

    key = jax.random.PRNGKey(0)
    pkey, ikey, tkey = jax.random.split(key, 3)
    params = init_params(pkey, cfg)

    inputs = jax.random.randint(ikey, (B, T), 1, cfg["vocab_size"], dtype=jnp.int32)
    targets = jax.random.randint(tkey, (B, T), 1, cfg["vocab_size"], dtype=jnp.int32)
    targets = targets.at[:, -2:].set(PAD)  # exercise the padding-ignore path

    fwd = jax.jit(lambda p, i, t: forward(p, cfg, i, t))
    loss = jax.block_until_ready(fwd(params, inputs, targets))
    assert loss.shape == () and bool(jnp.isfinite(loss))
    print("KERNEL_OK")
</pallas_src>

<mosaic_0001>
module attributes {stable_mosaic.version = 11 : i64} {
  func.func @_attn_block_kernel(%arg0: i32, %arg1: memref<8x32xbf16, #tpu.memory_space<vmem>>, %arg2: memref<32x96xbf16, #tpu.memory_space<vmem>>, %arg3: memref<1x96xf32, #tpu.memory_space<vmem>>, %arg4: memref<32x32xbf16, #tpu.memory_space<vmem>>, %arg5: memref<1x32xf32, #tpu.memory_space<vmem>>, %arg6: memref<1x32xf32, #tpu.memory_space<vmem>>, %arg7: memref<1x32xf32, #tpu.memory_space<vmem>>, %arg8: memref<8x32xbf16, #tpu.memory_space<vmem>>) attributes {dimension_semantics = [#tpu.dimension_semantics<parallel>], iteration_bounds = array<i64: 2>, scalar_prefetch = 0 : i64, scratch_operands = 0 : i64, tpu.core_type = #tpu.core_type<tc>, window_params = [{transform_indices = @transform_0, window_bounds = array<i64: 8, 32>}, {pipeline_mode = #tpu.pipeline_mode<synchronous>, transform_indices = @transform_1, window_bounds = array<i64: 32, 96>}, {pipeline_mode = #tpu.pipeline_mode<synchronous>, transform_indices = @transform_2, window_bounds = array<i64: 1, 96>}, {pipeline_mode = #tpu.pipeline_mode<synchronous>, transform_indices = @transform_3, window_bounds = array<i64: 32, 32>}, {pipeline_mode = #tpu.pipeline_mode<synchronous>, transform_indices = @transform_4, window_bounds = array<i64: 1, 32>}, {pipeline_mode = #tpu.pipeline_mode<synchronous>, transform_indices = @transform_5, window_bounds = array<i64: 1, 32>}, {pipeline_mode = #tpu.pipeline_mode<synchronous>, transform_indices = @transform_6, window_bounds = array<i64: 1, 32>}, {transform_indices = @transform_7, window_bounds = array<i64: 8, 32>}]} {
    %c0 = arith.constant 0 : index
    %c0_0 = arith.constant 0 : index
    %0 = vector.load %arg1[%c0, %c0_0] : memref<8x32xbf16, #tpu.memory_space<vmem>>, vector<8x32xbf16>
    %1 = arith.extf %0 : vector<8x32xbf16> to vector<8x32xf32>
    %c0_1 = arith.constant 0 : index
    %c0_2 = arith.constant 0 : index
    %2 = vector.load %arg2[%c0_1, %c0_2] : memref<32x96xbf16, #tpu.memory_space<vmem>>, vector<32x96xbf16>
    %cst = arith.constant dense<0.000000e+00> : vector<8x96xf32>
    %3 = tpu.matmul %0, %2, %cst {dimension_numbers = #tpu.dot_dimension_numbers<[1], [0], [0], [1], [0, 0, 1, 1], [], []>} : vector<8x32xbf16>, vector<32x96xbf16>, vector<8x96xf32> -> vector<8x96xf32>
    %c0_3 = arith.constant 0 : index
    %c0_4 = arith.constant 0 : index
    %4 = vector.load %arg3[%c0_3, %c0_4] : memref<1x96xf32, #tpu.memory_space<vmem>>, vector<1x96xf32>
    %5 = vector.broadcast %4 : vector<1x96xf32> to vector<8x96xf32>
    %6 = arith.addf %3, %5 : vector<8x96xf32>
    %7 = tpu.iota {dimensions = array<i32: 0>} : vector<8x8xi32>
    %8 = tpu.iota {dimensions = array<i32: 1>} : vector<8x8xi32>
    %9 = arith.cmpi sge, %7, %8 : vector<8x8xi32>
    %10 = vector.extract_strided_slice %6 {offsets = [0, 0], sizes = [8, 8], strides = [1, 1]} : vector<8x96xf32> to vector<8x8xf32>
    %11 = vector.extract_strided_slice %6 {offsets = [0, 32], sizes = [8, 8], strides = [1, 1]} : vector<8x96xf32> to vector<8x8xf32>
    %12 = vector.extract_strided_slice %6 {offsets = [0, 64], sizes = [8, 8], strides = [1, 1]} : vector<8x96xf32> to vector<8x8xf32>
    %13 = arith.truncf %10 : vector<8x8xf32> to vector<8x8xbf16>
    %14 = arith.truncf %11 : vector<8x8xf32> to vector<8x8xbf16>
    %cst_5 = arith.constant dense<0.000000e+00> : vector<8x8xf32>
    %15 = tpu.matmul %13, %14, %cst_5 {dimension_numbers = #tpu.dot_dimension_numbers<[1], [1], [0], [0], [0, 0, 1, 0], [], []>} : vector<8x8xbf16>, vector<8x8xbf16>, vector<8x8xf32> -> vector<8x8xf32>
    %cst_6 = arith.constant -1.000000e+30 : f32
    %16 = vector.broadcast %cst_6 : f32 to vector<8x8xf32>
    %17 = arith.select %9, %15, %16 : vector<8x8xi1>, vector<8x8xf32>
    %cst_7 = arith.constant dense<0xFF800000> : vector<8xf32>
    %18 = vector.multi_reduction <maximumf>, %17, %cst_7 [1] : vector<8x8xf32> to vector<8xf32>
    %19 = vector.shape_cast %18 : vector<8xf32> to vector<8x1xf32>
    %20 = vector.broadcast %19 : vector<8x1xf32> to vector<8x8xf32>
    %21 = arith.subf %17, %20 : vector<8x8xf32>
    %22 = math.exp %21 : vector<8x8xf32>
    %cst_8 = arith.constant dense<0.000000e+00> : vector<8xf32>
    %23 = vector.multi_reduction <add>, %22, %cst_8 [1] : vector<8x8xf32> to vector<8xf32>
    %24 = vector.shape_cast %23 : vector<8xf32> to vector<8x1xf32>
    %25 = tpu.reciprocal %24 {approx = true} : vector<8x1xf32> -> vector<8x1xf32>
    %26 = vector.broadcast %25 : vector<8x1xf32> to vector<8x8xf32>
    %27 = arith.mulf %22, %26 : vector<8x8xf32>
    %28 = arith.truncf %27 : vector<8x8xf32> to vector<8x8xbf16>
    %29 = arith.truncf %12 : vector<8x8xf32> to vector<8x8xbf16>
    %cst_9 = arith.constant dense<0.000000e+00> : vector<8x8xf32>
    %30 = tpu.matmul %28, %29, %cst_9 {dimension_numbers = #tpu.dot_dimension_numbers<[1], [0], [0], [1], [0, 0, 1, 1], [], []>} : vector<8x8xbf16>, vector<8x8xbf16>, vector<8x8xf32> -> vector<8x8xf32>
    %31 = vector.extract_strided_slice %6 {offsets = [0, 8], sizes = [8, 8], strides = [1, 1]} : vector<8x96xf32> to vector<8x8xf32>
    %32 = vector.extract_strided_slice %6 {offsets = [0, 40], sizes = [8, 8], strides = [1, 1]} : vector<8x96xf32> to vector<8x8xf32>
    %33 = vector.extract_strided_slice %6 {offsets = [0, 72], sizes = [8, 8], strides = [1, 1]} : vector<8x96xf32> to vector<8x8xf32>
    %34 = arith.truncf %31 : vector<8x8xf32> to vector<8x8xbf16>
    %35 = arith.truncf %32 : vector<8x8xf32> to vector<8x8xbf16>
    %cst_10 = arith.constant dense<0.000000e+00> : vector<8x8xf32>
    %36 = tpu.matmul %34, %35, %cst_10 {dimension_numbers = #tpu.dot_dimension_numbers<[1], [1], [0], [0], [0, 0, 1, 0], [], []>} : vector<8x8xbf16>, vector<8x8xbf16>, vector<8x8xf32> -> vector<8x8xf32>
    %cst_11 = arith.constant -1.000000e+30 : f32
    %37 = vector.broadcast %cst_11 : f32 to vector<8x8xf32>
    %38 = arith.select %9, %36, %37 : vector<8x8xi1>, vector<8x8xf32>
    %cst_12 = arith.constant dense<0xFF800000> : vector<8xf32>
    %39 = vector.multi_reduction <maximumf>, %38, %cst_12 [1] : vector<8x8xf32> to vector<8xf32>
    %40 = vector.shape_cast %39 : vector<8xf32> to vector<8x1xf32>
    %41 = vector.broadcast %40 : vector<8x1xf32> to vector<8x8xf32>
    %42 = arith.subf %38, %41 : vector<8x8xf32>
    %43 = math.exp %42 : vector<8x8xf32>
    %cst_13 = arith.constant dense<0.000000e+00> : vector<8xf32>
    %44 = vector.multi_reduction <add>, %43, %cst_13 [1] : vector<8x8xf32> to vector<8xf32>
    %45 = vector.shape_cast %44 : vector<8xf32> to vector<8x1xf32>
    %46 = tpu.reciprocal %45 {approx = true} : vector<8x1xf32> -> vector<8x1xf32>
    %47 = vector.broadcast %46 : vector<8x1xf32> to vector<8x8xf32>
    %48 = arith.mulf %43, %47 : vector<8x8xf32>
    %49 = arith.truncf %48 : vector<8x8xf32> to vector<8x8xbf16>
    %50 = arith.truncf %33 : vector<8x8xf32> to vector<8x8xbf16>
    %cst_14 = arith.constant dense<0.000000e+00> : vector<8x8xf32>
    %51 = tpu.matmul %49, %50, %cst_14 {dimension_numbers = #tpu.dot_dimension_numbers<[1], [0], [0], [1], [0, 0, 1, 1], [], []>} : vector<8x8xbf16>, vector<8x8xbf16>, vector<8x8xf32> -> vector<8x8xf32>
    %52 = vector.extract_strided_slice %6 {offsets = [0, 16], sizes = [8, 8], strides = [1, 1]} : vector<8x96xf32> to vector<8x8xf32>
    %53 = vector.extract_strided_slice %6 {offsets = [0, 48], sizes = [8, 8], strides = [1, 1]} : vector<8x96xf32> to vector<8x8xf32>
    %54 = vector.extract_strided_slice %6 {offsets = [0, 80], sizes = [8, 8], strides = [1, 1]} : vector<8x96xf32> to vector<8x8xf32>
    %55 = arith.truncf %52 : vector<8x8xf32> to vector<8x8xbf16>
    %56 = arith.truncf %53 : vector<8x8xf32> to vector<8x8xbf16>
    %cst_15 = arith.constant dense<0.000000e+00> : vector<8x8xf32>
    %57 = tpu.matmul %55, %56, %cst_15 {dimension_numbers = #tpu.dot_dimension_numbers<[1], [1], [0], [0], [0, 0, 1, 0], [], []>} : vector<8x8xbf16>, vector<8x8xbf16>, vector<8x8xf32> -> vector<8x8xf32>
    %cst_16 = arith.constant -1.000000e+30 : f32
    %58 = vector.broadcast %cst_16 : f32 to vector<8x8xf32>
    %59 = arith.select %9, %57, %58 : vector<8x8xi1>, vector<8x8xf32>
    %cst_17 = arith.constant dense<0xFF800000> : vector<8xf32>
    %60 = vector.multi_reduction <maximumf>, %59, %cst_17 [1] : vector<8x8xf32> to vector<8xf32>
    %61 = vector.shape_cast %60 : vector<8xf32> to vector<8x1xf32>
    %62 = vector.broadcast %61 : vector<8x1xf32> to vector<8x8xf32>
    %63 = arith.subf %59, %62 : vector<8x8xf32>
    %64 = math.exp %63 : vector<8x8xf32>
    %cst_18 = arith.constant dense<0.000000e+00> : vector<8xf32>
    %65 = vector.multi_reduction <add>, %64, %cst_18 [1] : vector<8x8xf32> to vector<8xf32>
    %66 = vector.shape_cast %65 : vector<8xf32> to vector<8x1xf32>
    %67 = tpu.reciprocal %66 {approx = true} : vector<8x1xf32> -> vector<8x1xf32>
    %68 = vector.broadcast %67 : vector<8x1xf32> to vector<8x8xf32>
    %69 = arith.mulf %64, %68 : vector<8x8xf32>
    %70 = arith.truncf %69 : vector<8x8xf32> to vector<8x8xbf16>
    %71 = arith.truncf %54 : vector<8x8xf32> to vector<8x8xbf16>
    %cst_19 = arith.constant dense<0.000000e+00> : vector<8x8xf32>
    %72 = tpu.matmul %70, %71, %cst_19 {dimension_numbers = #tpu.dot_dimension_numbers<[1], [0], [0], [1], [0, 0, 1, 1], [], []>} : vector<8x8xbf16>, vector<8x8xbf16>, vector<8x8xf32> -> vector<8x8xf32>
    %73 = vector.extract_strided_slice %6 {offsets = [0, 24], sizes = [8, 8], strides = [1, 1]} : vector<8x96xf32> to vector<8x8xf32>
    %74 = vector.extract_strided_slice %6 {offsets = [0, 56], sizes = [8, 8], strides = [1, 1]} : vector<8x96xf32> to vector<8x8xf32>
    %75 = vector.extract_strided_slice %6 {offsets = [0, 88], sizes = [8, 8], strides = [1, 1]} : vector<8x96xf32> to vector<8x8xf32>
    %76 = arith.truncf %73 : vector<8x8xf32> to vector<8x8xbf16>
    %77 = arith.truncf %74 : vector<8x8xf32> to vector<8x8xbf16>
    %cst_20 = arith.constant dense<0.000000e+00> : vector<8x8xf32>
    %78 = tpu.matmul %76, %77, %cst_20 {dimension_numbers = #tpu.dot_dimension_numbers<[1], [1], [0], [0], [0, 0, 1, 0], [], []>} : vector<8x8xbf16>, vector<8x8xbf16>, vector<8x8xf32> -> vector<8x8xf32>
    %cst_21 = arith.constant -1.000000e+30 : f32
    %79 = vector.broadcast %cst_21 : f32 to vector<8x8xf32>
    %80 = arith.select %9, %78, %79 : vector<8x8xi1>, vector<8x8xf32>
    %cst_22 = arith.constant dense<0xFF800000> : vector<8xf32>
    %81 = vector.multi_reduction <maximumf>, %80, %cst_22 [1] : vector<8x8xf32> to vector<8xf32>
    %82 = vector.shape_cast %81 : vector<8xf32> to vector<8x1xf32>
    %83 = vector.broadcast %82 : vector<8x1xf32> to vector<8x8xf32>
    %84 = arith.subf %80, %83 : vector<8x8xf32>
    %85 = math.exp %84 : vector<8x8xf32>
    %cst_23 = arith.constant dense<0.000000e+00> : vector<8xf32>
    %86 = vector.multi_reduction <add>, %85, %cst_23 [1] : vector<8x8xf32> to vector<8xf32>
    %87 = vector.shape_cast %86 : vector<8xf32> to vector<8x1xf32>
    %88 = tpu.reciprocal %87 {approx = true} : vector<8x1xf32> -> vector<8x1xf32>
    %89 = vector.broadcast %88 : vector<8x1xf32> to vector<8x8xf32>
    %90 = arith.mulf %85, %89 : vector<8x8xf32>
    %91 = arith.truncf %90 : vector<8x8xf32> to vector<8x8xbf16>
    %92 = arith.truncf %75 : vector<8x8xf32> to vector<8x8xbf16>
    %cst_24 = arith.constant dense<0.000000e+00> : vector<8x8xf32>
    %93 = tpu.matmul %91, %92, %cst_24 {dimension_numbers = #tpu.dot_dimension_numbers<[1], [0], [0], [1], [0, 0, 1, 1], [], []>} : vector<8x8xbf16>, vector<8x8xbf16>, vector<8x8xf32> -> vector<8x8xf32>
    %94 = tpu.concatenate %30, %51, %72, %93 in 1 : vector<8x8xf32>, vector<8x8xf32>, vector<8x8xf32>, vector<8x8xf32> -> vector<8x32xf32>
    %95 = arith.truncf %94 : vector<8x32xf32> to vector<8x32xbf16>
    %c0_25 = arith.constant 0 : index
    %c0_26 = arith.constant 0 : index
    %96 = vector.load %arg4[%c0_25, %c0_26] : memref<32x32xbf16, #tpu.memory_space<vmem>>, vector<32x32xbf16>
    %cst_27 = arith.constant dense<0.000000e+00> : vector<8x32xf32>
    %97 = tpu.matmul %95, %96, %cst_27 {dimension_numbers = #tpu.dot_dimension_numbers<[1], [0], [0], [1], [0, 0, 1, 1], [], []>} : vector<8x32xbf16>, vector<32x32xbf16>, vector<8x32xf32> -> vector<8x32xf32>
    %c0_28 = arith.constant 0 : index
    %c0_29 = arith.constant 0 : index
    %98 = vector.load %arg5[%c0_28, %c0_29] : memref<1x32xf32, #tpu.memory_space<vmem>>, vector<1x32xf32>
    %99 = vector.broadcast %98 : vector<1x32xf32> to vector<8x32xf32>
    %100 = arith.addf %97, %99 : vector<8x32xf32>
    %101 = arith.addf %1, %100 : vector<8x32xf32>
    %c0_30 = arith.constant 0 : index
    %c0_31 = arith.constant 0 : index
    %102 = vector.load %arg6[%c0_30, %c0_31] : memref<1x32xf32, #tpu.memory_space<vmem>>, vector<1x32xf32>
    %c0_32 = arith.constant 0 : index
    %c0_33 = arith.constant 0 : index
    %103 = vector.load %arg7[%c0_32, %c0_33] : memref<1x32xf32, #tpu.memory_space<vmem>>, vector<1x32xf32>
    %cst_34 = arith.constant dense<0.000000e+00> : vector<8xf32>
    %104 = vector.multi_reduction <add>, %101, %cst_34 [1] : vector<8x32xf32> to vector<8xf32>
    %105 = vector.shape_cast %104 : vector<8xf32> to vector<8x1xf32>
    %cst_35 = arith.constant 3.200000e+01 : f32
    %106 = vector.broadcast %cst_35 : f32 to vector<8x1xf32>
    %107 = arith.divf %105, %106 : vector<8x1xf32>
    %108 = vector.broadcast %107 : vector<8x1xf32> to vector<8x32xf32>
    %109 = arith.subf %101, %108 : vector<8x32xf32>
    %110 = arith.mulf %109, %109 : vector<8x32xf32>
    %cst_36 = arith.constant dense<0.000000e+00> : vector<8xf32>
    %111 = vector.multi_reduction <add>, %110, %cst_36 [1] : vector<8x32xf32> to vector<8xf32>
    %112 = vector.shape_cast %111 : vector<8xf32> to vector<8x1xf32>
    %cst_37 = arith.constant 3.200000e+01 : f32
    %113 = vector.broadcast %cst_37 : f32 to vector<8x1xf32>
    %114 = arith.divf %112, %113 : vector<8x1xf32>
    %cst_38 = arith.constant 9.99999974E-6 : f32
    %115 = vector.broadcast %cst_38 : f32 to vector<8x1xf32>
    %116 = arith.addf %114, %115 : vector<8x1xf32>
    %117 = math.rsqrt %116 : vector<8x1xf32>
    %118 = vector.broadcast %117 : vector<8x1xf32> to vector<8x32xf32>
    %119 = arith.mulf %109, %118 : vector<8x32xf32>
    %120 = vector.broadcast %102 : vector<1x32xf32> to vector<8x32xf32>
    %121 = arith.mulf %119, %120 : vector<8x32xf32>
    %122 = vector.broadcast %103 : vector<1x32xf32> to vector<8x32xf32>
    %123 = arith.addf %121, %122 : vector<8x32xf32>
    %124 = arith.truncf %123 : vector<8x32xf32> to vector<8x32xbf16>
    %c0_39 = arith.constant 0 : index
    %c0_40 = arith.constant 0 : index
    %125 = vector.load %arg8[%c0_39, %c0_40] : memref<8x32xbf16, #tpu.memory_space<vmem>>, vector<8x32xbf16>
    tpu.vector_store %arg8[%c0_39, %c0_40], %124 {strides = array<i32>} : memref<8x32xbf16, #tpu.memory_space<vmem>>, vector<8x32xbf16>,
    return
  }
  func.func @transform_0(%arg0: i32) -> (i32, i32) {
    %c0_i32 = arith.constant 0 : i32
    %c0_i32_0 = arith.constant 0 : i32
    return %arg0, %c0_i32 : i32, i32
  }
  func.func @transform_1(%arg0: i32) -> (i32, i32) {
    %c0_i32 = arith.constant 0 : i32
    %c0_i32_0 = arith.constant 0 : i32
    %c0_i32_1 = arith.constant 0 : i32
    return %c0_i32, %c0_i32_0 : i32, i32
  }
  func.func @transform_2(%arg0: i32) -> (i32, i32) {
    %c0_i32 = arith.constant 0 : i32
    %c0_i32_0 = arith.constant 0 : i32
    %c0_i32_1 = arith.constant 0 : i32
    return %c0_i32, %c0_i32_0 : i32, i32
  }
  func.func @transform_3(%arg0: i32) -> (i32, i32) {
    %c0_i32 = arith.constant 0 : i32
    %c0_i32_0 = arith.constant 0 : i32
    %c0_i32_1 = arith.constant 0 : i32
    return %c0_i32, %c0_i32_0 : i32, i32
  }
  func.func @transform_4(%arg0: i32) -> (i32, i32) {
    %c0_i32 = arith.constant 0 : i32
    %c0_i32_0 = arith.constant 0 : i32
    %c0_i32_1 = arith.constant 0 : i32
    return %c0_i32, %c0_i32_0 : i32, i32
  }
  func.func @transform_5(%arg0: i32) -> (i32, i32) {
    %c0_i32 = arith.constant 0 : i32
    %c0_i32_0 = arith.constant 0 : i32
    %c0_i32_1 = arith.constant 0 : i32
    return %c0_i32, %c0_i32_0 : i32, i32
  }
  func.func @transform_6(%arg0: i32) -> (i32, i32) {
    %c0_i32 = arith.constant 0 : i32
    %c0_i32_0 = arith.constant 0 : i32
    %c0_i32_1 = arith.constant 0 : i32
    return %c0_i32, %c0_i32_0 : i32, i32
  }
  func.func @transform_7(%arg0: i32) -> (i32, i32) {
    %c0_i32 = arith.constant 0 : i32
    %c0_i32_0 = arith.constant 0 : i32
    return %arg0, %c0_i32 : i32, i32
  }
}

module attributes {stable_mosaic.version = 11 : i64} {
  func.func @_ffn_block_kernel(%arg0: i32, %arg1: memref<16x32xbf16, #tpu.memory_space<vmem>>, %arg2: memref<32x128xbf16, #tpu.memory_space<vmem>>, %arg3: memref<1x128xf32, #tpu.memory_space<vmem>>, %arg4: memref<64x32xbf16, #tpu.memory_space<vmem>>, %arg5: memref<1x32xf32, #tpu.memory_space<vmem>>, %arg6: memref<1x32xf32, #tpu.memory_space<vmem>>, %arg7: memref<1x32xf32, #tpu.memory_space<vmem>>, %arg8: memref<16x32xbf16, #tpu.memory_space<vmem>>) attributes {dimension_semantics = [#tpu.dimension_semantics<parallel>], iteration_bounds = array<i64: 1>, scalar_prefetch = 0 : i64, scratch_operands = 0 : i64, tpu.core_type = #tpu.core_type<tc>, window_params = [{transform_indices = @transform_0, window_bounds = array<i64: 16, 32>}, {pipeline_mode = #tpu.pipeline_mode<synchronous>, transform_indices = @transform_1, window_bounds = array<i64: 32, 128>}, {pipeline_mode = #tpu.pipeline_mode<synchronous>, transform_indices = @transform_2, window_bounds = array<i64: 1, 128>}, {pipeline_mode = #tpu.pipeline_mode<synchronous>, transform_indices = @transform_3, window_bounds = array<i64: 64, 32>}, {pipeline_mode = #tpu.pipeline_mode<synchronous>, transform_indices = @transform_4, window_bounds = array<i64: 1, 32>}, {pipeline_mode = #tpu.pipeline_mode<synchronous>, transform_indices = @transform_5, window_bounds = array<i64: 1, 32>}, {pipeline_mode = #tpu.pipeline_mode<synchronous>, transform_indices = @transform_6, window_bounds = array<i64: 1, 32>}, {transform_indices = @transform_7, window_bounds = array<i64: 16, 32>}]} {
    %c0 = arith.constant 0 : index
    %c0_0 = arith.constant 0 : index
    %0 = vector.load %arg1[%c0, %c0_0] : memref<16x32xbf16, #tpu.memory_space<vmem>>, vector<16x32xbf16>
    %1 = arith.extf %0 : vector<16x32xbf16> to vector<16x32xf32>
    %c0_1 = arith.constant 0 : index
    %c0_2 = arith.constant 0 : index
    %2 = vector.load %arg2[%c0_1, %c0_2] : memref<32x128xbf16, #tpu.memory_space<vmem>>, vector<32x128xbf16>
    %cst = arith.constant dense<0.000000e+00> : vector<16x128xf32>
    %3 = tpu.matmul %0, %2, %cst {dimension_numbers = #tpu.dot_dimension_numbers<[1], [0], [0], [1], [0, 0, 1, 1], [], []>} : vector<16x32xbf16>, vector<32x128xbf16>, vector<16x128xf32> -> vector<16x128xf32>
    %c0_3 = arith.constant 0 : index
    %c0_4 = arith.constant 0 : index
    %4 = vector.load %arg3[%c0_3, %c0_4] : memref<1x128xf32, #tpu.memory_space<vmem>>, vector<1x128xf32>
    %5 = vector.broadcast %4 : vector<1x128xf32> to vector<16x128xf32>
    %6 = arith.addf %3, %5 : vector<16x128xf32>
    %7 = vector.extract_strided_slice %6 {offsets = [0, 0], sizes = [16, 64], strides = [1, 1]} : vector<16x128xf32> to vector<16x64xf32>
    %8 = vector.extract_strided_slice %6 {offsets = [0, 64], sizes = [16, 64], strides = [1, 1]} : vector<16x128xf32> to vector<16x64xf32>
    %9 = arith.negf %8 : vector<16x64xf32>
    %10 = math.exp %9 : vector<16x64xf32>
    %cst_5 = arith.constant 1.000000e+00 : f32
    %11 = vector.broadcast %cst_5 : f32 to vector<16x64xf32>
    %12 = arith.addf %11, %10 : vector<16x64xf32>
    %13 = arith.divf %11, %12 : vector<16x64xf32>
    %14 = arith.mulf %7, %13 : vector<16x64xf32>
    %15 = arith.truncf %14 : vector<16x64xf32> to vector<16x64xbf16>
    %c0_6 = arith.constant 0 : index
    %c0_7 = arith.constant 0 : index
    %16 = vector.load %arg4[%c0_6, %c0_7] : memref<64x32xbf16, #tpu.memory_space<vmem>>, vector<64x32xbf16>
    %cst_8 = arith.constant dense<0.000000e+00> : vector<16x32xf32>
    %17 = tpu.matmul %15, %16, %cst_8 {dimension_numbers = #tpu.dot_dimension_numbers<[1], [0], [0], [1], [0, 0, 1, 1], [], []>} : vector<16x64xbf16>, vector<64x32xbf16>, vector<16x32xf32> -> vector<16x32xf32>
    %c0_9 = arith.constant 0 : index
    %c0_10 = arith.constant 0 : index
    %18 = vector.load %arg5[%c0_9, %c0_10] : memref<1x32xf32, #tpu.memory_space<vmem>>, vector<1x32xf32>
    %19 = vector.broadcast %18 : vector<1x32xf32> to vector<16x32xf32>
    %20 = arith.addf %17, %19 : vector<16x32xf32>
    %21 = arith.addf %1, %20 : vector<16x32xf32>
    %c0_11 = arith.constant 0 : index
    %c0_12 = arith.constant 0 : index
    %22 = vector.load %arg6[%c0_11, %c0_12] : memref<1x32xf32, #tpu.memory_space<vmem>>, vector<1x32xf32>
    %c0_13 = arith.constant 0 : index
    %c0_14 = arith.constant 0 : index
    %23 = vector.load %arg7[%c0_13, %c0_14] : memref<1x32xf32, #tpu.memory_space<vmem>>, vector<1x32xf32>
    %cst_15 = arith.constant dense<0.000000e+00> : vector<16xf32>
    %24 = vector.multi_reduction <add>, %21, %cst_15 [1] : vector<16x32xf32> to vector<16xf32>
    %25 = vector.shape_cast %24 : vector<16xf32> to vector<16x1xf32>
    %cst_16 = arith.constant 3.200000e+01 : f32
    %26 = vector.broadcast %cst_16 : f32 to vector<16x1xf32>
    %27 = arith.divf %25, %26 : vector<16x1xf32>
    %28 = vector.broadcast %27 : vector<16x1xf32> to vector<16x32xf32>
    %29 = arith.subf %21, %28 : vector<16x32xf32>
    %30 = arith.mulf %29, %29 : vector<16x32xf32>
    %cst_17 = arith.constant dense<0.000000e+00> : vector<16xf32>
    %31 = vector.multi_reduction <add>, %30, %cst_17 [1] : vector<16x32xf32> to vector<16xf32>
    %32 = vector.shape_cast %31 : vector<16xf32> to vector<16x1xf32>
    %cst_18 = arith.constant 3.200000e+01 : f32
    %33 = vector.broadcast %cst_18 : f32 to vector<16x1xf32>
    %34 = arith.divf %32, %33 : vector<16x1xf32>
    %cst_19 = arith.constant 9.99999974E-6 : f32
    %35 = vector.broadcast %cst_19 : f32 to vector<16x1xf32>
    %36 = arith.addf %34, %35 : vector<16x1xf32>
    %37 = math.rsqrt %36 : vector<16x1xf32>
    %38 = vector.broadcast %37 : vector<16x1xf32> to vector<16x32xf32>
    %39 = arith.mulf %29, %38 : vector<16x32xf32>
    %40 = vector.broadcast %22 : vector<1x32xf32> to vector<16x32xf32>
    %41 = arith.mulf %39, %40 : vector<16x32xf32>
    %42 = vector.broadcast %23 : vector<1x32xf32> to vector<16x32xf32>
    %43 = arith.addf %41, %42 : vector<16x32xf32>
    %44 = arith.truncf %43 : vector<16x32xf32> to vector<16x32xbf16>
    %c0_20 = arith.constant 0 : index
    %c0_21 = arith.constant 0 : index
    %45 = vector.load %arg8[%c0_20, %c0_21] : memref<16x32xbf16, #tpu.memory_space<vmem>>, vector<16x32xbf16>
    tpu.vector_store %arg8[%c0_20, %c0_21], %44 {strides = array<i32>} : memref<16x32xbf16, #tpu.memory_space<vmem>>, vector<16x32xbf16>,
    return
  }
  func.func @transform_0(%arg0: i32) -> (i32, i32) {
    %c0_i32 = arith.constant 0 : i32
    %c0_i32_0 = arith.constant 0 : i32
    return %arg0, %c0_i32 : i32, i32
  }
  func.func @transform_1(%arg0: i32) -> (i32, i32) {
    %c0_i32 = arith.constant 0 : i32
    %c0_i32_0 = arith.constant 0 : i32
    %c0_i32_1 = arith.constant 0 : i32
    return %c0_i32, %c0_i32_0 : i32, i32
  }
  func.func @transform_2(%arg0: i32) -> (i32, i32) {
    %c0_i32 = arith.constant 0 : i32
    %c0_i32_0 = arith.constant 0 : i32
    %c0_i32_1 = arith.constant 0 : i32
    return %c0_i32, %c0_i32_0 : i32, i32
  }
  func.func @transform_3(%arg0: i32) -> (i32, i32) {
    %c0_i32 = arith.constant 0 : i32
    %c0_i32_0 = arith.constant 0 : i32
    %c0_i32_1 = arith.constant 0 : i32
    return %c0_i32, %c0_i32_0 : i32, i32
  }
  func.func @transform_4(%arg0: i32) -> (i32, i32) {
    %c0_i32 = arith.constant 0 : i32
    %c0_i32_0 = arith.constant 0 : i32
    %c0_i32_1 = arith.constant 0 : i32
    return %c0_i32, %c0_i32_0 : i32, i32
  }
  func.func @transform_5(%arg0: i32) -> (i32, i32) {
    %c0_i32 = arith.constant 0 : i32
    %c0_i32_0 = arith.constant 0 : i32
    %c0_i32_1 = arith.constant 0 : i32
    return %c0_i32, %c0_i32_0 : i32, i32
  }
  func.func @transform_6(%arg0: i32) -> (i32, i32) {
    %c0_i32 = arith.constant 0 : i32
    %c0_i32_0 = arith.constant 0 : i32
    %c0_i32_1 = arith.constant 0 : i32
    return %c0_i32, %c0_i32_0 : i32, i32
  }
  func.func @transform_7(%arg0: i32) -> (i32, i32) {
    %c0_i32 = arith.constant 0 : i32
    %c0_i32_0 = arith.constant 0 : i32
    return %arg0, %c0_i32 : i32, i32
  }
}

module attributes {stable_mosaic.version = 11 : i64} {
  func.func @_head_loss_kernel(%arg0: i32, %arg1: i32, %arg2: memref<16x32xbf16, #tpu.memory_space<vmem>>, %arg3: memref<50x32xbf16, #tpu.memory_space<vmem>>, %arg4: memref<1x50xf32, #tpu.memory_space<vmem>>, %arg5: memref<16x1xi32, #tpu.memory_space<vmem>>, %arg6: memref<16x1xf32, #tpu.memory_space<vmem>>, %arg7: memref<16x1xf32, #tpu.memory_space<vmem>>, %arg8: memref<16x1xf32, #tpu.memory_space<vmem>>, %arg9: memref<16x1xf32, #tpu.memory_space<vmem>>, %arg10: memref<16x1xf32, #tpu.memory_space<vmem>>) attributes {dimension_semantics = [#tpu.dimension_semantics<parallel>, #tpu.dimension_semantics<arbitrary>], iteration_bounds = array<i64: 1, 1>, scalar_prefetch = 0 : i64, scratch_operands = 4 : i64, tpu.core_type = #tpu.core_type<tc>, window_params = [{transform_indices = @transform_0, window_bounds = array<i64: 16, 32>}, {transform_indices = @transform_1, window_bounds = array<i64: 50, 32>}, {transform_indices = @transform_2, window_bounds = array<i64: 1, 50>}, {transform_indices = @transform_3, window_bounds = array<i64: 16, 1>}, {transform_indices = @transform_4, window_bounds = array<i64: 16, 1>}]} {
    %c0_i32 = arith.constant 0 : i32
    %0 = arith.cmpi eq, %arg1, %c0_i32 : i32
    %1 = arith.extui %0 : i1 to i32
    %c0_i32_0 = arith.constant 0 : i32
    %2 = arith.cmpi ne, %1, %c0_i32_0 : i32
    scf.if %2 {
      %cst_31 = arith.constant -1.000000e+30 : f32
      %47 = vector.broadcast %cst_31 : f32 to vector<16x1xf32>
      %c0_32 = arith.constant 0 : index
      %c0_33 = arith.constant 0 : index
      %48 = vector.load %arg7[%c0_32, %c0_33] : memref<16x1xf32, #tpu.memory_space<vmem>>, vector<16x1xf32>
      tpu.vector_store %arg7[%c0_32, %c0_33], %47 {strides = array<i32>} : memref<16x1xf32, #tpu.memory_space<vmem>>, vector<16x1xf32>,
      %cst_34 = arith.constant 0.000000e+00 : f32
      %49 = vector.broadcast %cst_34 : f32 to vector<16x1xf32>
      %c0_35 = arith.constant 0 : index
      %c0_36 = arith.constant 0 : index
      %50 = vector.load %arg8[%c0_35, %c0_36] : memref<16x1xf32, #tpu.memory_space<vmem>>, vector<16x1xf32>
      tpu.vector_store %arg8[%c0_35, %c0_36], %49 {strides = array<i32>} : memref<16x1xf32, #tpu.memory_space<vmem>>, vector<16x1xf32>,
      %cst_37 = arith.constant 0.000000e+00 : f32
      %51 = vector.broadcast %cst_37 : f32 to vector<16x1xf32>
      %c0_38 = arith.constant 0 : index
      %c0_39 = arith.constant 0 : index
      %52 = vector.load %arg9[%c0_38, %c0_39] : memref<16x1xf32, #tpu.memory_space<vmem>>, vector<16x1xf32>
      tpu.vector_store %arg9[%c0_38, %c0_39], %51 {strides = array<i32>} : memref<16x1xf32, #tpu.memory_space<vmem>>, vector<16x1xf32>,
      %cst_40 = arith.constant 0.000000e+00 : f32
      %53 = vector.broadcast %cst_40 : f32 to vector<16x1xf32>
      %c0_41 = arith.constant 0 : index
      %c0_42 = arith.constant 0 : index
      %54 = vector.load %arg10[%c0_41, %c0_42] : memref<16x1xf32, #tpu.memory_space<vmem>>, vector<16x1xf32>
      tpu.vector_store %arg10[%c0_41, %c0_42], %53 {strides = array<i32>} : memref<16x1xf32, #tpu.memory_space<vmem>>, vector<16x1xf32>,
    } else {
    }
    %c0 = arith.constant 0 : index
    %c0_1 = arith.constant 0 : index
    %3 = vector.load %arg2[%c0, %c0_1] : memref<16x32xbf16, #tpu.memory_space<vmem>>, vector<16x32xbf16>
    %c0_2 = arith.constant 0 : index
    %c0_3 = arith.constant 0 : index
    %4 = vector.load %arg3[%c0_2, %c0_3] : memref<50x32xbf16, #tpu.memory_space<vmem>>, vector<50x32xbf16>
    %cst = arith.constant dense<0.000000e+00> : vector<16x50xf32>
    %5 = tpu.matmul %3, %4, %cst {dimension_numbers = #tpu.dot_dimension_numbers<[1], [1], [0], [0], [0, 0, 1, 0], [], []>} : vector<16x32xbf16>, vector<50x32xbf16>, vector<16x50xf32> -> vector<16x50xf32>
    %c0_4 = arith.constant 0 : index
    %c0_5 = arith.constant 0 : index
    %6 = vector.load %arg4[%c0_4, %c0_5] : memref<1x50xf32, #tpu.memory_space<vmem>>, vector<1x50xf32>
    %7 = vector.broadcast %6 : vector<1x50xf32> to vector<16x50xf32>
    %8 = arith.addf %5, %7 : vector<16x50xf32>
    %c0_6 = arith.constant 0 : index
    %c0_7 = arith.constant 0 : index
    %9 = vector.load %arg5[%c0_6, %c0_7] : memref<16x1xi32, #tpu.memory_space<vmem>>, vector<16x1xi32>
    %c0_8 = arith.constant 0 : index
    %c0_9 = arith.constant 0 : index
    %10 = vector.load %arg7[%c0_8, %c0_9] : memref<16x1xf32, #tpu.memory_space<vmem>>, vector<16x1xf32>
    %cst_10 = arith.constant dense<0xFF800000> : vector<16xf32>
    %11 = vector.multi_reduction <maximumf>, %8, %cst_10 [1] : vector<16x50xf32> to vector<16xf32>
    %12 = vector.shape_cast %11 : vector<16xf32> to vector<16x1xf32>
    %13 = arith.maximumf %10, %12 : vector<16x1xf32>
    %c0_11 = arith.constant 0 : index
    %c0_12 = arith.constant 0 : index
    %14 = vector.load %arg8[%c0_11, %c0_12] : memref<16x1xf32, #tpu.memory_space<vmem>>, vector<16x1xf32>
    %15 = arith.subf %10, %13 : vector<16x1xf32>
    %16 = math.exp %15 : vector<16x1xf32>
    %17 = arith.mulf %14, %16 : vector<16x1xf32>
    %18 = vector.broadcast %13 : vector<16x1xf32> to vector<16x50xf32>
    %19 = arith.subf %8, %18 : vector<16x50xf32>
    %20 = math.exp %19 : vector<16x50xf32>
    %cst_13 = arith.constant dense<0.000000e+00> : vector<16xf32>
    %21 = vector.multi_reduction <add>, %20, %cst_13 [1] : vector<16x50xf32> to vector<16xf32>
    %22 = vector.shape_cast %21 : vector<16xf32> to vector<16x1xf32>
    %23 = arith.addf %17, %22 : vector<16x1xf32>
    %c0_14 = arith.constant 0 : index
    %c0_15 = arith.constant 0 : index
    %24 = vector.load %arg8[%c0_14, %c0_15] : memref<16x1xf32, #tpu.memory_space<vmem>>, vector<16x1xf32>
    tpu.vector_store %arg8[%c0_14, %c0_15], %23 {strides = array<i32>} : memref<16x1xf32, #tpu.memory_space<vmem>>, vector<16x1xf32>,
    %c0_16 = arith.constant 0 : index
    %c0_17 = arith.constant 0 : index
    %25 = vector.load %arg7[%c0_16, %c0_17] : memref<16x1xf32, #tpu.memory_space<vmem>>, vector<16x1xf32>
    tpu.vector_store %arg7[%c0_16, %c0_17], %13 {strides = array<i32>} : memref<16x1xf32, #tpu.memory_space<vmem>>, vector<16x1xf32>,
    %c0_18 = arith.constant 0 : index
    %c0_19 = arith.constant 0 : index
    %26 = vector.load %arg9[%c0_18, %c0_19] : memref<16x1xf32, #tpu.memory_space<vmem>>, vector<16x1xf32>
    %cst_20 = arith.constant dense<0.000000e+00> : vector<16xf32>
    %27 = vector.multi_reduction <add>, %8, %cst_20 [1] : vector<16x50xf32> to vector<16xf32>
    %28 = vector.shape_cast %27 : vector<16xf32> to vector<16x1xf32>
    %29 = arith.addf %26, %28 : vector<16x1xf32>
    %c0_21 = arith.constant 0 : index
    %c0_22 = arith.constant 0 : index
    %30 = vector.load %arg9[%c0_21, %c0_22] : memref<16x1xf32, #tpu.memory_space<vmem>>, vector<16x1xf32>
    tpu.vector_store %arg9[%c0_21, %c0_22], %29 {strides = array<i32>} : memref<16x1xf32, #tpu.memory_space<vmem>>, vector<16x1xf32>,
    %31 = tpu.iota {dimensions = array<i32: 1>} : vector<16x50xi32>
    %c50_i32 = arith.constant 50 : i32
    %32 = arith.muli %arg1, %c50_i32 : i32
    %33 = vector.broadcast %32 : i32 to vector<16x1xi32>
    %34 = arith.subi %9, %33 : vector<16x1xi32>
    %c0_23 = arith.constant 0 : index
    %c0_24 = arith.constant 0 : index
    %35 = vector.load %arg10[%c0_23, %c0_24] : memref<16x1xf32, #tpu.memory_space<vmem>>, vector<16x1xf32>
    %36 = vector.broadcast %34 : vector<16x1xi32> to vector<16x50xi32>
    %37 = arith.cmpi eq, %31, %36 : vector<16x50xi32>
    %cst_25 = arith.constant 0.000000e+00 : f32
    %38 = vector.broadcast %cst_25 : f32 to vector<16x50xf32>
    %39 = arith.select %37, %8, %38 : vector<16x50xi1>, vector<16x50xf32>
    %cst_26 = arith.constant dense<0.000000e+00> : vector<16xf32>
    %40 = vector.multi_reduction <add>, %39, %cst_26 [1] : vector<16x50xf32> to vector<16xf32>
    %41 = vector.shape_cast %40 : vector<16xf32> to vector<16x1xf32>
    %42 = arith.addf %35, %41 : vector<16x1xf32>
    %c0_27 = arith.constant 0 : index
    %c0_28 = arith.constant 0 : index
    %43 = vector.load %arg10[%c0_27, %c0_28] : memref<16x1xf32, #tpu.memory_space<vmem>>, vector<16x1xf32>
    tpu.vector_store %arg10[%c0_27, %c0_28], %42 {strides = array<i32>} : memref<16x1xf32, #tpu.memory_space<vmem>>, vector<16x1xf32>,
    %c0_i32_29 = arith.constant 0 : i32
    %44 = arith.cmpi eq, %arg1, %c0_i32_29 : i32
    %45 = arith.extui %44 : i1 to i32
    %c0_i32_30 = arith.constant 0 : i32
    %46 = arith.cmpi ne, %45, %c0_i32_30 : i32
    scf.if %46 {
      %c0_31 = arith.constant 0 : index
      %c0_32 = arith.constant 0 : index
      %47 = vector.load %arg7[%c0_31, %c0_32] : memref<16x1xf32, #tpu.memory_space<vmem>>, vector<16x1xf32>
      %c0_33 = arith.constant 0 : index
      %c0_34 = arith.constant 0 : index
      %48 = vector.load %arg8[%c0_33, %c0_34] : memref<16x1xf32, #tpu.memory_space<vmem>>, vector<16x1xf32>
      %49 = math.log %48 : vector<16x1xf32>
      %50 = arith.addf %47, %49 : vector<16x1xf32>
      %c0_35 = arith.constant 0 : index
      %c0_36 = arith.constant 0 : index
      %51 = vector.load %arg10[%c0_35, %c0_36] : memref<16x1xf32, #tpu.memory_space<vmem>>, vector<16x1xf32>
      %52 = arith.subf %51, %50 : vector<16x1xf32>
      %c0_37 = arith.constant 0 : index
      %c0_38 = arith.constant 0 : index
      %53 = vector.load %arg9[%c0_37, %c0_38] : memref<16x1xf32, #tpu.memory_space<vmem>>, vector<16x1xf32>
      %cst_39 = arith.constant 5.000000e+01 : f32
      %54 = vector.broadcast %cst_39 : f32 to vector<16x1xf32>
      %55 = arith.mulf %54, %50 : vector<16x1xf32>
      %56 = arith.subf %53, %55 : vector<16x1xf32>
      %cst_40 = arith.constant 0.899999976 : f32
      %57 = vector.broadcast %cst_40 : f32 to vector<16x1xf32>
      %58 = arith.mulf %57, %52 : vector<16x1xf32>
      %cst_41 = arith.constant -7.142650e-01 : f32
      %59 = vector.broadcast %cst_41 : f32 to vector<16x1xf32>
      %60 = arith.subf %59, %58 : vector<16x1xf32>
      %61 = arith.subf %56, %52 : vector<16x1xf32>
      %cst_42 = arith.constant 0.00204081624 : f32
      %62 = vector.broadcast %cst_42 : f32 to vector<16x1xf32>
      %63 = arith.mulf %62, %61 : vector<16x1xf32>
      %64 = arith.subf %60, %63 : vector<16x1xf32>
      %c0_i32_43 = arith.constant 0 : i32
      %65 = vector.broadcast %c0_i32_43 : i32 to vector<16x1xi32>
      %66 = arith.cmpi eq, %9, %65 : vector<16x1xi32>
      %cst_44 = arith.constant 0.000000e+00 : f32
      %67 = vector.broadcast %cst_44 : f32 to vector<16x1xf32>
      %68 = arith.select %66, %67, %64 : vector<16x1xi1>, vector<16x1xf32>
      %c0_45 = arith.constant 0 : index
      %c0_46 = arith.constant 0 : index
      %69 = vector.load %arg6[%c0_45, %c0_46] : memref<16x1xf32, #tpu.memory_space<vmem>>, vector<16x1xf32>
      tpu.vector_store %arg6[%c0_45, %c0_46], %68 {strides = array<i32>} : memref<16x1xf32, #tpu.memory_space<vmem>>, vector<16x1xf32>,
    } else {
    }
    return
  }
  func.func @transform_0(%arg0: i32, %arg1: i32) -> (i32, i32) {
    %c0_i32 = arith.constant 0 : i32
    %c0_i32_0 = arith.constant 0 : i32
    return %arg0, %c0_i32 : i32, i32
  }
  func.func @transform_1(%arg0: i32, %arg1: i32) -> (i32, i32) {
    %c0_i32 = arith.constant 0 : i32
    %c0_i32_0 = arith.constant 0 : i32
    return %arg1, %c0_i32 : i32, i32
  }
  func.func @transform_2(%arg0: i32, %arg1: i32) -> (i32, i32) {
    %c0_i32 = arith.constant 0 : i32
    %c0_i32_0 = arith.constant 0 : i32
    return %c0_i32, %arg1 : i32, i32
  }
  func.func @transform_3(%arg0: i32, %arg1: i32) -> (i32, i32) {
    %c0_i32 = arith.constant 0 : i32
    %c0_i32_0 = arith.constant 0 : i32
    return %arg0, %c0_i32 : i32, i32
  }
  func.func @transform_4(%arg0: i32, %arg1: i32) -> (i32, i32) {
    %c0_i32 = arith.constant 0 : i32
    %c0_i32_0 = arith.constant 0 : i32
    return %arg0, %c0_i32 : i32, i32
  }
}

</mosaic_0001>

<llo_original>
// kernel: _lambda_.6
$region0: #{_lambda_.6}
  #allocation0 [shape = 'u32[]', space=smem, size = 0x4, offset = 0x4, fixed_abs, tag = 'smem constant byte address 0x4 - core index']
  #allocation1 [shape = 'u32[144,128]{1,0:T(1,128)}', space=vmem, size = 0x12000, scoped, tag = 'internal scratch']
  %s0 = inlined_call_operand.hbm [shape: bf16[16,32], index: 0, kind: input, shape index: {}]
  %s1 = inlined_call_operand.hbm [shape: bf16[32,128], index: 1, kind: input, shape index: {}]
  %s2 = inlined_call_operand.hbm [shape: f32[1,128], index: 2, kind: input, shape index: {}]
  %s3 = inlined_call_operand.hbm [shape: bf16[64,32], index: 3, kind: input, shape index: {}]
  %s4 = inlined_call_operand.hbm [shape: f32[1,32], index: 4, kind: input, shape index: {}]
  %s5 = inlined_call_operand.hbm [shape: f32[1,32], index: 5, kind: input, shape index: {}]
  %s6 = inlined_call_operand.hbm [shape: f32[1,32], index: 6, kind: input, shape index: {}]
  %s7 = inlined_call_operand.hbm [shape: bf16[16,32], index: 7, kind: output, shape index: {}]
  %s8 = sld [smem:[#allocation0]]
  $region66: #{_lambda_.6} parent=0
    _
  %s10 = ssub.s32 1, %s8
  %s11 = scalar_select 0, %s10, %s8
  $region1: #{_lambda_.6} parent=0
    #allocation2 [shape = 'u8[4096]{0}', space=vmem, size = 0x1000, scoped, tag = 'input window, operand 0, single buffered']
    #allocation3 [shape = 's32[1]{0}', space=sflag, size = 0x4, scoped, tag = 'scoped memory for _lambda_.6']
    #allocation4 [shape = 's32[1]{0}', space=sflag, size = 0x4, scoped, tag = 'scoped memory for _lambda_.6']
    #allocation5 [shape = 'u8[8192]{0}', space=vmem, size = 0x2000, scoped, tag = 'input window, operand 1, single buffered']
    #allocation6 [shape = 's32[1]{0}', space=sflag, size = 0x4, scoped, tag = 'scoped memory for _lambda_.6']
    #allocation7 [shape = 'u8[512]{0}', space=vmem, size = 0x400, scoped, tag = 'input window, operand 2, single buffered']
    #allocation8 [shape = 'u8[16384]{0}', space=vmem, size = 0x4000, scoped, tag = 'input window, operand 3, single buffered']
    #allocation9 [shape = 's32[1]{0}', space=sflag, size = 0x4, scoped, tag = 'scoped memory for _lambda_.6']
    #allocation10 [shape = 'u8[512]{0}', space=vmem, size = 0x400, scoped, tag = 'input window, operand 4, single buffered']
    #allocation11 [shape = 'u8[512]{0}', space=vmem, size = 0x400, scoped, tag = 'input window, operand 5, single buffered']
    #allocation12 [shape = 's32[1]{0}', space=sflag, size = 0x4, scoped, tag = 'scoped memory for _lambda_.6']
    #allocation13 [shape = 'u8[512]{0}', space=vmem, size = 0x400, scoped, tag = 'input window, operand 6, single buffered']
    #allocation14 [shape = 'u8[4096]{0}', space=vmem, size = 0x1000, scoped, tag = 'output window, operand 0, single buffered']
    %12 = vsyncpa [#allocation3], 0
    %13 = vsyncpa [#allocation6], 0
    %14 = vsyncpa [#allocation9], 0
    %15 = vsyncpa [#allocation12], 0
    %16 = vsyncpa [#allocation4], 0
    // Predicated region
    $region2: #{_lambda_.6} parent=1 // pred_check
      _
    $region3: #{_lambda_.6} parent=1 // pred_check_branch
      %18 = sbr.rel (0) target = $region5
    $region4: #{_lambda_.6} parent=1 // pred_region
      %s20 = ssub.s32 128, 128
      %21 = vsyncadd [#allocation3], %s20
      %s22 = sshll.u32 [#allocation2], 4
      %s23 = int_to_ptr.vmem [resolvable:$true] %s22
      %28 = dma.hbm_to_vmem [thread:$0]  %s0, 128, %s23, [#allocation3], 64, 64, 4
    $region5: #{_lambda_.6} parent=1 // pred_fallthru
      _
    // Predicated region
    $region6: #{_lambda_.6} parent=1 // pred_check
      _
    $region7: #{_lambda_.6} parent=1 // pred_check_branch
      %30 = sbr.rel (0) target = $region9
    $region8: #{_lambda_.6} parent=1 // pred_region
      %s32 = ssub.s32 256, 256
      %33 = vsyncadd [#allocation6], %s32
      %s34 = sshll.u32 [#allocation5], 4
      %s35 = int_to_ptr.vmem [resolvable:$true] %s34
      %40 = dma.hbm_to_vmem [thread:$0]  %s1, 256, %s35, [#allocation6], 64, 64, 4
    $region9: #{_lambda_.6} parent=1 // pred_fallthru
      _
    // Predicated region
    $region10: #{_lambda_.6} parent=1 // pred_check
      _
    $region11: #{_lambda_.6} parent=1 // pred_check_branch
      %42 = sbr.rel (0) target = $region13
    $region12: #{_lambda_.6} parent=1 // pred_region
      %s44 = ssub.s32 16, 16
      %45 = vsyncadd [#allocation6], %s44
      %s47 = sshll.u32 [#allocation7], 4
      %s48 = int_to_ptr.vmem [resolvable:$true] %s47
      %50 = dma.hbm_to_vmem [thread:$0]  %s2, 16, %s48, [#allocation6]
    $region13: #{_lambda_.6} parent=1 // pred_fallthru
      _
    // Predicated region
    $region14: #{_lambda_.6} parent=1 // pred_check
      _
    $region15: #{_lambda_.6} parent=1 // pred_check_branch
      %52 = sbr.rel (0) target = $region17
    $region16: #{_lambda_.6} parent=1 // pred_region
      %s54 = ssub.s32 512, 512
      %55 = vsyncadd [#allocation9], %s54
      %s56 = sshll.u32 [#allocation8], 4
      %s57 = int_to_ptr.vmem [resolvable:$true] %s56
      %62 = dma.hbm_to_vmem [thread:$0]  %s3, 512, %s57, [#allocation9], 64, 64, 4
    $region17: #{_lambda_.6} parent=1 // pred_fallthru
      _
    // Predicated region
    $region18: #{_lambda_.6} parent=1 // pred_check
      _
    $region19: #{_lambda_.6} parent=1 // pred_check_branch
      %64 = sbr.rel (0) target = $region21
    $region20: #{_lambda_.6} parent=1 // pred_region
      %s66 = ssub.s32 16, 16
      %67 = vsyncadd [#allocation9], %s66
      %s69 = sshll.u32 [#allocation10], 4
      %s70 = int_to_ptr.vmem [resolvable:$true] %s69
      %72 = dma.hbm_to_vmem [thread:$0]  %s4, 16, %s70, [#allocation9]
    $region21: #{_lambda_.6} parent=1 // pred_fallthru
      _
    // Predicated region
    $region22: #{_lambda_.6} parent=1 // pred_check
      _
    $region23: #{_lambda_.6} parent=1 // pred_check_branch
      %74 = sbr.rel (0) target = $region25
    $region24: #{_lambda_.6} parent=1 // pred_region
      %s76 = ssub.s32 16, 16
      %77 = vsyncadd [#allocation12], %s76
      %s79 = sshll.u32 [#allocation11], 4
      %s80 = int_to_ptr.vmem [resolvable:$true] %s79
      %82 = dma.hbm_to_vmem [thread:$0]  %s5, 16, %s80, [#allocation12]
    $region25: #{_lambda_.6} parent=1 // pred_fallthru
      _
    // Predicated region
    $region26: #{_lambda_.6} parent=1 // pred_check
      _
    $region27: #{_lambda_.6} parent=1 // pred_check_branch
      %84 = sbr.rel (0) target = $region29
    $region28: #{_lambda_.6} parent=1 // pred_region
      %s86 = ssub.s32 16, 16
      %87 = vsyncadd [#allocation12], %s86
      %s89 = sshll.u32 [#allocation13], 4
      %s90 = int_to_ptr.vmem [resolvable:$true] %s89
      %92 = dma.hbm_to_vmem [thread:$0]  %s6, 16, %s90, [#allocation12]
    $region29: #{_lambda_.6} parent=1 // pred_fallthru
      _
    // Predicated region
    $region30: #{_lambda_.6} parent=1 // pred_check
      _
    $region31: #{_lambda_.6} parent=1 // pred_check_branch
      %94 = sbr.rel (0) target = $region33
    $region32: #{_lambda_.6} parent=1 // pred_region
      %95 = dma.done [#allocation3], 128
    $region33: #{_lambda_.6} parent=1 // pred_fallthru
      _
    // Predicated region
    $region34: #{_lambda_.6} parent=1 // pred_check
      _
    $region35: #{_lambda_.6} parent=1 // pred_check_branch
      %97 = sbr.rel (0) target = $region37
    $region36: #{_lambda_.6} parent=1 // pred_region
      %98 = dma.done [#allocation6], 256
    $region37: #{_lambda_.6} parent=1 // pred_fallthru
      _
    // Predicated region
    $region38: #{_lambda_.6} parent=1 // pred_check
      _
    $region39: #{_lambda_.6} parent=1 // pred_check_branch
      %100 = sbr.rel (0) target = $region41
    $region40: #{_lambda_.6} parent=1 // pred_region
      %101 = dma.done [#allocation6], 16
    $region41: #{_lambda_.6} parent=1 // pred_fallthru
      _
    // Predicated region
    $region42: #{_lambda_.6} parent=1 // pred_check
      _
    $region43: #{_lambda_.6} parent=1 // pred_check_branch
      %103 = sbr.rel (0) target = $region45
    $region44: #{_lambda_.6} parent=1 // pred_region
      %104 = dma.done [#allocation9], 512
    $region45: #{_lambda_.6} parent=1 // pred_fallthru
      _
    // Predicated region
    $region46: #{_lambda_.6} parent=1 // pred_check
      _
    $region47: #{_lambda_.6} parent=1 // pred_check_branch
      %106 = sbr.rel (0) target = $region49
    $region48: #{_lambda_.6} parent=1 // pred_region
      %107 = dma.done [#allocation9], 16
    $region49: #{_lambda_.6} parent=1 // pred_fallthru
      _
    // Predicated region
    $region50: #{_lambda_.6} parent=1 // pred_check
      _
    $region51: #{_lambda_.6} parent=1 // pred_check_branch
      %109 = sbr.rel (0) target = $region53
    $region52: #{_lambda_.6} parent=1 // pred_region
      %110 = dma.done [#allocation12], 16
    $region53: #{_lambda_.6} parent=1 // pred_fallthru
      _
    // Predicated region
    $region54: #{_lambda_.6} parent=1 // pred_check
      _
    $region55: #{_lambda_.6} parent=1 // pred_check_branch
      %112 = sbr.rel (0) target = $region57
    $region56: #{_lambda_.6} parent=1 // pred_region
      %113 = dma.done [#allocation12], 16
    $region57: #{_lambda_.6} parent=1 // pred_fallthru
      _
    %v115 = vld [vmem:[#allocation2] sm:$0xf]
    %v116 = vld [vmem:[#allocation2 + $0x4] sm:$0xf]
    %v117 = vunpack.c.l.bf16 %v115
    %v118 = vunpack.c.l.bf16 %v116
    %v119 = vld [vmem:[#allocation5] sm:$0xf]
    %v120 = vld [vmem:[#allocation5 + $0x4] sm:$0xf]
    %v121 = vld [vmem:[#allocation5 + $0x8] sm:$0xf]
    %v122 = vld [vmem:[#allocation5 + $0xc] sm:$0xf]
    %v123 = vld [vmem:[#allocation7] sm:$0x1]
    %v125 = vlaneseq
    %v126 = vshrl.u32 %v125, 7
    %v127 = vsub.s32 0, %v126
    %v128 = vrot.slane %v123, %v127
    %v132 = vunpack.c.l.b16 %v115
    %v133 = vunpack.c.l.b16 %v116
    %v134 = vpack.c.b16 %v133, %v132
    %v139 = vunpack.c.l.b16 %v119
    %v140 = vunpack.c.l.b16 %v120
    %v141 = vunpack.c.l.b16 %v121
    %v142 = vunpack.c.l.b16 %v122
    %v143 = vpack.c.b16 %v140, %v139
    %v144 = vpack.c.b16 %v142, %v141
    %vm147 = vcmask 261120
    %v149 = vsel %vm147, %v134, 0
    %151 = vmatprep.subr.bf16.mxu0 0
    %152 = vmatpush1.bf16.msra.mxu0 %v143
    %153 = vmatprep.subr.bf16.mxu0 0
    %154 = vmatpush1.bf16.msra.mxu0 %v144
    %155 = vmatprep.subr.bf16.mxu0 0
    %156 = vmatpush1.bf16.msra.mxu0 0
    %157 = vmatprep.subr.bf16.mxu0 0
    %158 = vmatpush1.bf16.msra.mxu0 0
    %159 = vmatprep.subr.bf16.mxu0 0
    %160 = vmatpush1.bf16.msra.mxu0 0
    %161 = vmatprep.subr.bf16.mxu0 0
    %162 = vmatpush1.bf16.msra.mxu0 0
    %163 = vmatprep.subr.bf16.mxu0 0
    %164 = vmatpush1.bf16.msra.mxu0 0
    %165 = vmatprep.subr.bf16.mxu0 0
    %166 = vmatpush1.bf16.msra.mxu0 0
    %167 = vmatprep.subr.bf16.mxu0 0
    %168 = vmatpush1.bf16.msra.mxu0 0
    %169 = vmatprep.subr.bf16.mxu0 0
    %170 = vmatpush1.bf16.msra.mxu0 0
    %171 = vmatprep.subr.bf16.mxu0 0
    %172 = vmatpush1.bf16.msra.mxu0 0
    %173 = vmatprep.subr.bf16.mxu0 0
    %174 = vmatpush1.bf16.msra.mxu0 0
    %175 = vmatprep.subr.bf16.mxu0 0
    %176 = vmatpush1.bf16.msra.mxu0 0
    %177 = vmatprep.subr.bf16.mxu0 0
    %178 = vmatpush1.bf16.msra.mxu0 0
    %179 = vmatprep.subr.bf16.mxu0 0
    %180 = vmatpush1.bf16.msra.mxu0 0
    %181 = vmatprep.subr.bf16.mxu0 0
    %182 = vmatpush1.bf16.msra.mxu0 0
    %183 = vmatprep.mubr.bf16.mxu0 0
    %184 = vmatmul.mubr.bf16.gmra.mrb[0].mxu0 %v149
    %v185 = vpop.f32.mrb[0].mxu0
    %v186 = vadd.f32 %v128, %v185
    %v187 = vpop.f32.mrb[0].mxu0
    %v188 = vpop.f32.mrb[0].mxu0
    %v189 = vadd.f32 %v128, %v188
    %v190 = vpop.f32.mrb[0].mxu0
    %191 = vdwg.mxu0
    %v192 = vxor.u32 %v186, 2147483648
    %v193 = vxor.u32 %v189, 2147483648
    %v194 = vmul.f32 %v192, 1.442695
    %v195 = vpow.pop %v194
    %v196 = vmul.f32 %v193, 1.442695
    %v197 = vpow.pop %v196
    %v198 = vadd.f32 %v195, 1.0
    %v199 = vadd.f32 %v197, 1.0
    %v200 = vrcp.pop %v198
    %v201 = vmul.f32 1.0, %v200
    %v202 = vrcp.pop %v199
    %v203 = vmul.f32 1.0, %v202
    %206 = vrot.lane.b32.xlu0 %v201, 64
    %v207 = vpop.permute.xlu0 %206
    %208 = vrot.lane.b32.xlu0 %v203, 64
    %v209 = vpop.permute.xlu0 %208
    %v212 = vmul.f32 %v186, %v207
    %v213 = vmul.f32 %v189, %v209
    %v214 = vpack.c.bf16 %v213, %v212
    %v215 = vld [vmem:[#allocation8] sm:$0xf]
    %v216 = vld [vmem:[#allocation8 + $0x4] sm:$0xf]
    %v217 = vld [vmem:[#allocation8 + $0x8] sm:$0xf]
    %v218 = vld [vmem:[#allocation8 + $0xc] sm:$0xf]
    %v219 = vld [vmem:[#allocation8 + $0x10] sm:$0xf]
    %v220 = vld [vmem:[#allocation8 + $0x14] sm:$0xf]
    %v221 = vld [vmem:[#allocation8 + $0x18] sm:$0xf]
    %v222 = vld [vmem:[#allocation8 + $0x1c] sm:$0xf]
    %v223 = vld [vmem:[#allocation10] sm:$0x1]
    %v225 = vlaneseq
    %v226 = vshrl.u32 %v225, 7
    %v227 = vsub.s32 0, %v226
    %v228 = vrot.slane %v223, %v227
    %v238 = vunpack.c.l.b16 %v215
    %v239 = vunpack.c.l.b16 %v216
    %v240 = vunpack.c.l.b16 %v217
    %v241 = vunpack.c.l.b16 %v218
    %v242 = vunpack.c.l.b16 %v219
    %v243 = vunpack.c.l.b16 %v220
    %v244 = vunpack.c.l.b16 %v221
    %v245 = vunpack.c.l.b16 %v222
    %v246 = vpack.c.b16 %v239, %v238
    %v247 = vpack.c.b16 %v241, %v240
    %v248 = vpack.c.b16 %v243, %v242
    %v249 = vpack.c.b16 %v245, %v244
    %vm254 = vcmask 523264
    %v256 = vsel %vm254, %v214, 0
    %258 = vmatprep.subr.bf16.mxu0 0
    %259 = vmatpush1.bf16.msra.mxu0 %v246
    %260 = vmatprep.subr.bf16.mxu0 0
    %261 = vmatpush1.bf16.msra.mxu0 %v247
    %262 = vmatprep.subr.bf16.mxu0 0
    %263 = vmatpush1.bf16.msra.mxu0 %v248
    %264 = vmatprep.subr.bf16.mxu0 0
    %265 = vmatpush1.bf16.msra.mxu0 %v249
    %266 = vmatprep.subr.bf16.mxu0 0
    %267 = vmatpush1.bf16.msra.mxu0 0
    %268 = vmatprep.subr.bf16.mxu0 0
    %269 = vmatpush1.bf16.msra.mxu0 0
    %270 = vmatprep.subr.bf16.mxu0 0
    %271 = vmatpush1.bf16.msra.mxu0 0
    %272 = vmatprep.subr.bf16.mxu0 0
    %273 = vmatpush1.bf16.msra.mxu0 0
    %274 = vmatprep.subr.bf16.mxu0 0
    %275 = vmatpush1.bf16.msra.mxu0 0
    %276 = vmatprep.subr.bf16.mxu0 0
    %277 = vmatpush1.bf16.msra.mxu0 0
    %278 = vmatprep.subr.bf16.mxu0 0
    %279 = vmatpush1.bf16.msra.mxu0 0
    %280 = vmatprep.subr.bf16.mxu0 0
    %281 = vmatpush1.bf16.msra.mxu0 0
    %282 = vmatprep.subr.bf16.mxu0 0
    %283 = vmatpush1.bf16.msra.mxu0 0
    %284 = vmatprep.subr.bf16.mxu0 0
    %285 = vmatpush1.bf16.msra.mxu0 0
    %286 = vmatprep.subr.bf16.mxu0 0
    %287 = vmatpush1.bf16.msra.mxu0 0
    %288 = vmatprep.subr.bf16.mxu0 0
    %289 = vmatpush1.bf16.msra.mxu0 0
    %290 = vmatprep.mubr.bf16.mxu0 0
    %291 = vmatmul.mubr.bf16.gmra.mrb[0].mxu0 %v256
    %v292 = vpop.f32.mrb[0].mxu0
    %v293 = vadd.f32 %v228, %v292
    %v294 = vpop.f32.mrb[0].mxu0
    %v295 = vpop.f32.mrb[0].mxu0
    %v296 = vadd.f32 %v228, %v295
    %v297 = vpop.f32.mrb[0].mxu0
    %298 = vdwg.mxu0
    %v299 = vadd.f32 %v117, %v293
    %v300 = vadd.f32 %v118, %v296
    %v301 = vld [vmem:[#allocation11] sm:$0x1]
    %v302 = vld [vmem:[#allocation13] sm:$0x1]
    %v303 = vsel %vm147, %v299, 0.0
    %304 = vadd.xlane.f32.xlu0 %v303
    %v305 = vpop.xlane.xlu0 %304
    %v306 = vsel %vm147, %v300, 0.0
    %307 = vadd.xlane.f32.xlu0 %v306
    %v308 = vpop.xlane.xlu0 %307
    %v309 = vrcp.pop 32.0
    %v310 = vmul.f32 %v305, %v309
    %v311 = vmul.f32 %v308, %v309
    %v312 = vsub.f32 %v299, %v310
    %v313 = vsub.f32 %v300, %v311
    %v314 = vmul.f32 %v312, %v312
    %v315 = vmul.f32 %v313, %v313
    %v316 = vsel %vm147, %v314, 0.0
    %317 = vadd.xlane.f32.xlu0 %v316
    %v318 = vpop.xlane.xlu0 %317
    %v319 = vsel %vm147, %v315, 0.0
    %320 = vadd.xlane.f32.xlu0 %v319
    %v321 = vpop.xlane.xlu0 %320
    %v322 = vmul.f32 %v318, %v309
    %v323 = vmul.f32 %v321, %v309
    %v324 = vadd.f32 %v322, 1e-05
    %v325 = vadd.f32 %v323, 1e-05
    %v326 = vrsqrt.pop %v324
    %v327 = vrsqrt.pop %v325
    %v328 = vmul.f32 %v312, %v326
    %v329 = vmul.f32 %v313, %v327
    %v331 = vlaneseq
    %v332 = vshrl.u32 %v331, 7
    %v333 = vsub.s32 0, %v332
    %v334 = vrot.slane %v301, %v333
    %v336 = vmul.f32 %v328, %v334
    %v337 = vmul.f32 %v329, %v334
    %v339 = vlaneseq
    %v340 = vshrl.u32 %v339, 7
    %v341 = vsub.s32 0, %v340
    %v342 = vrot.slane %v302, %v341
    %v344 = vadd.f32 %v336, %v342
    %v345 = vadd.f32 %v337, %v342
    %v346 = vpack.c.bf16 %v345, %v344
    %v348 = vunpack.c.l.b16 %v346
    %v349 = vunpack.c.h.b16 %v346
    %v350 = vpack.c.b16 %v348, %v348
    %v351 = vpack.c.b16 %v349, %v349
    %vm354 = vcmask 257024
    %355 = vst.msk [vmem:[#allocation14] sm:$0xf] %vm354, %v350
    %356 = vst.msk [vmem:[#allocation14 + $0x4] sm:$0xf] %vm354, %v351
    // Predicated region
    $region58: #{_lambda_.6} parent=1 // pred_check
      _
    $region59: #{_lambda_.6} parent=1 // pred_check_branch
      %358 = sbr.rel (0) target = $region61
    $region60: #{_lambda_.6} parent=1 // pred_region
      %s360 = ssub.s32 128, 128
      %361 = vsyncadd [#allocation4], %s360
      %s362 = sshll.u32 [#allocation14], 4
      %s363 = int_to_ptr.vmem [resolvable:$true] %s362
      %368 = dma.vmem_to_hbm [thread:$0]  %s363, 128, %s7, [#allocation4], 64, 64, 4
    $region61: #{_lambda_.6} parent=1 // pred_fallthru
      _
    // Predicated region
    $region62: #{_lambda_.6} parent=1 // pred_check
      _
    $region63: #{_lambda_.6} parent=1 // pred_check_branch
      %370 = sbr.rel (0) target = $region65
    $region64: #{_lambda_.6} parent=1 // pred_region
      %371 = dma.done [#allocation4], 128
    $region65: #{_lambda_.6} parent=1 // pred_fallthru
      _
    %372 = vsyncpa [#allocation3], 1
    %373 = vsyncpa [#allocation6], 1
    %374 = vsyncpa [#allocation9], 1
    %375 = vsyncpa [#allocation12], 1
    %376 = vsyncpa [#allocation4], 1

// kernel: _lambda_.9
$region0: #{_lambda_.9}
  #allocation0 [shape = 'u32[]', space=smem, size = 0x4, offset = 0x4, fixed_abs, tag = 'smem constant byte address 0x4 - core index']
  #allocation1 [shape = 'u32[144,128]{1,0:T(1,128)}', space=vmem, size = 0x12000, scoped, tag = 'internal scratch']
  #allocation2 [shape = 'f32[16,1]{1,0:T(8,128)}', space=vmem, size = 0x2000, scoped, tag = 'scratch operand']
  #allocation3 [shape = 'f32[16,1]{1,0:T(8,128)}', space=vmem, size = 0x2000, scoped, tag = 'scratch operand']
  #allocation4 [shape = 'f32[16,1]{1,0:T(8,128)}', space=vmem, size = 0x2000, scoped, tag = 'scratch operand']
  #allocation5 [shape = 'f32[16,1]{1,0:T(8,128)}', space=vmem, size = 0x2000, scoped, tag = 'scratch operand']
  %s0 = inlined_call_operand.hbm [shape: bf16[16,32], index: 0, kind: input, shape index: {}]
  %s1 = inlined_call_operand.hbm [shape: bf16[50,32], index: 1, kind: input, shape index: {}]
  %s2 = inlined_call_operand.hbm [shape: f32[1,50], index: 2, kind: input, shape index: {}]
  %s3 = inlined_call_operand.hbm [shape: s32[16,1], index: 3, kind: input, shape index: {}]
  %s4 = inlined_call_operand.hbm [shape: f32[16,1], index: 4, kind: output, shape index: {}]
  %s5 = sld [smem:[#allocation0]]
  $region50: #{_lambda_.9} parent=0
    _
  %s7 = ssub.s32 1, %s5
  %s8 = scalar_select 0, %s7, %s5
  $region1: #{_lambda_.9} parent=0
    #allocation6 [shape = 'u8[4096]{0}', space=vmem, size = 0x1000, scoped, tag = 'input window, operand 0, single buffered']
    #allocation7 [shape = 's32[1]{0}', space=sflag, size = 0x4, scoped, tag = 'scoped memory for _lambda_.9']
    #allocation8 [shape = 's32[1]{0}', space=sflag, size = 0x4, scoped, tag = 'scoped memory for _lambda_.9']
    #allocation9 [shape = 'u8[14336]{0}', space=vmem, size = 0x3800, scoped, tag = 'input window, operand 1, single buffered']
    #allocation10 [shape = 's32[1]{0}', space=sflag, size = 0x4, scoped, tag = 'scoped memory for _lambda_.9']
    #allocation11 [shape = 'u8[512]{0}', space=vmem, size = 0x400, scoped, tag = 'input window, operand 2, single buffered']
    #allocation12 [shape = 'u8[8192]{0}', space=vmem, size = 0x2000, scoped, tag = 'input window, operand 3, single buffered']
    #allocation13 [shape = 's32[1]{0}', space=sflag, size = 0x4, scoped, tag = 'scoped memory for _lambda_.9']
    #allocation14 [shape = 'u8[8192]{0}', space=vmem, size = 0x2000, scoped, tag = 'output window, operand 0, single buffered']
    %9 = vsyncpa [#allocation7], 0
    %10 = vsyncpa [#allocation10], 0
    %11 = vsyncpa [#allocation13], 0
    %12 = vsyncpa [#allocation8], 0
    // Predicated region
    $region2: #{_lambda_.9} parent=1 // pred_check
      _
    $region3: #{_lambda_.9} parent=1 // pred_check_branch
      %14 = sbr.rel (0) target = $region5
    $region4: #{_lambda_.9} parent=1 // pred_region
      %s16 = ssub.s32 128, 128
      %17 = vsyncadd [#allocation7], %s16
      %s18 = sshll.u32 [#allocation6], 4
      %s19 = int_to_ptr.vmem [resolvable:$true] %s18
      %24 = dma.hbm_to_vmem [thread:$0]  %s0, 128, %s19, [#allocation7], 64, 64, 4
    $region5: #{_lambda_.9} parent=1 // pred_fallthru
      _
    // Predicated region
    $region6: #{_lambda_.9} parent=1 // pred_check
      _
    $region7: #{_lambda_.9} parent=1 // pred_check_branch
      %26 = sbr.rel (0) target = $region9
    $region8: #{_lambda_.9} parent=1 // pred_region
      %s28 = ssub.s32 448, 448
      %29 = vsyncadd [#allocation10], %s28
      %s30 = sshll.u32 [#allocation9], 4
      %s31 = int_to_ptr.vmem [resolvable:$true] %s30
      %36 = dma.hbm_to_vmem [thread:$0]  %s1, 448, %s31, [#allocation10], 64, 64, 4
    $region9: #{_lambda_.9} parent=1 // pred_fallthru
      _
    // Predicated region
    $region10: #{_lambda_.9} parent=1 // pred_check
      _
    $region11: #{_lambda_.9} parent=1 // pred_check_branch
      %38 = sbr.rel (0) target = $region13
    $region12: #{_lambda_.9} parent=1 // pred_region
      %s40 = ssub.s32 16, 16
      %41 = vsyncadd [#allocation10], %s40
      %s43 = sshll.u32 [#allocation11], 4
      %s44 = int_to_ptr.vmem [resolvable:$true] %s43
      %46 = dma.hbm_to_vmem [thread:$0]  %s2, 16, %s44, [#allocation10]
    $region13: #{_lambda_.9} parent=1 // pred_fallthru
      _
    // Predicated region
    $region14: #{_lambda_.9} parent=1 // pred_check
      _
    $region15: #{_lambda_.9} parent=1 // pred_check_branch
      %48 = sbr.rel (0) target = $region17
    $region16: #{_lambda_.9} parent=1 // pred_region
      %s50 = ssub.s32 256, 256
      %51 = vsyncadd [#allocation13], %s50
      %s52 = sshll.u32 [#allocation12], 4
      %s53 = int_to_ptr.vmem [resolvable:$true] %s52
      %58 = dma.hbm_to_vmem [thread:$0]  %s3, 256, %s53, [#allocation13], 128, 128, 8
    $region17: #{_lambda_.9} parent=1 // pred_fallthru
      _
    // Predicated region
    $region18: #{_lambda_.9} parent=1 // pred_check
      _
    $region19: #{_lambda_.9} parent=1 // pred_check_branch
      %60 = sbr.rel (0) target = $region21
    $region20: #{_lambda_.9} parent=1 // pred_region
      %61 = dma.done [#allocation7], 128
    $region21: #{_lambda_.9} parent=1 // pred_fallthru
      _
    // Predicated region
    $region22: #{_lambda_.9} parent=1 // pred_check
      _
    $region23: #{_lambda_.9} parent=1 // pred_check_branch
      %63 = sbr.rel (0) target = $region25
    $region24: #{_lambda_.9} parent=1 // pred_region
      %64 = dma.done [#allocation10], 448
    $region25: #{_lambda_.9} parent=1 // pred_fallthru
      _
    // Predicated region
    $region26: #{_lambda_.9} parent=1 // pred_check
      _
    $region27: #{_lambda_.9} parent=1 // pred_check_branch
      %66 = sbr.rel (0) target = $region29
    $region28: #{_lambda_.9} parent=1 // pred_region
      %67 = dma.done [#allocation10], 16
    $region29: #{_lambda_.9} parent=1 // pred_fallthru
      _
    // Predicated region
    $region30: #{_lambda_.9} parent=1 // pred_check
      _
    $region31: #{_lambda_.9} parent=1 // pred_check_branch
      %69 = sbr.rel (0) target = $region33
    $region32: #{_lambda_.9} parent=1 // pred_region
      %70 = dma.done [#allocation13], 256
    $region33: #{_lambda_.9} parent=1 // pred_fallthru
      _
    %p72 = scmp.eq.s32.totalorder 0, 0
    // Predicated region
    $region34: #{_lambda_.9} parent=1 // pred_check
      %p73 = pneg %p72
    $region35: #{_lambda_.9} parent=1 // pred_check_branch
      %75 = sbr.rel (%p73) target = $region37
    $region36: #{_lambda_.9} parent=1 // pred_region
      %vm76 = vcmask 7168
      %77 = vst.msk [vmem:[#allocation2] sm:$0xff] %vm76, -1e+30
      %78 = vst.msk [vmem:[#allocation2 + $0x8] sm:$0xff] %vm76, -1e+30
      %79 = vst.msk [vmem:[#allocation3] sm:$0xff] %vm76, 0.0
      %80 = vst.msk [vmem:[#allocation3 + $0x8] sm:$0xff] %vm76, 0.0
      %81 = vst.msk [vmem:[#allocation4] sm:$0xff] %vm76, 0.0
      %82 = vst.msk [vmem:[#allocation4 + $0x8] sm:$0xff] %vm76, 0.0
      %83 = vst.msk [vmem:[#allocation5] sm:$0xff] %vm76, 0.0
      %84 = vst.msk [vmem:[#allocation5 + $0x8] sm:$0xff] %vm76, 0.0
    $region37: #{_lambda_.9} parent=1 // pred_fallthru
      _
    %v85 = vld [vmem:[#allocation6] sm:$0xf]
    %v86 = vld [vmem:[#allocation6 + $0x4] sm:$0xf]
    %v87 = vld [vmem:[#allocation9] sm:$0xf]
    %v88 = vld [vmem:[#allocation9 + $0x4] sm:$0xf]
    %v89 = vld [vmem:[#allocation9 + $0x8] sm:$0xf]
    %v90 = vld [vmem:[#allocation9 + $0xc] sm:$0xf]
    %v91 = vld [vmem:[#allocation9 + $0x10] sm:$0xf]
    %v92 = vld [vmem:[#allocation9 + $0x14] sm:$0xf]
    %v93 = vld [vmem:[#allocation9 + $0x18] sm:$0x1]
    %v94 = vld [vmem:[#allocation11] sm:$0x1]
    %v96 = vlaneseq
    %v97 = vshrl.u32 %v96, 7
    %v98 = vsub.s32 0, %v97
    %v99 = vrot.slane %v94, %v98
    %v103 = vunpack.c.l.b16 %v85
    %v104 = vunpack.c.l.b16 %v86
    %v105 = vpack.c.b16 %v104, %v103
    %v113 = vunpack.c.l.b16 %v87
    %v114 = vunpack.c.l.b16 %v88
    %v115 = vunpack.c.l.b16 %v89
    %v116 = vunpack.c.l.b16 %v90
    %v117 = vunpack.c.l.b16 %v91
    %v118 = vunpack.c.l.b16 %v92
    %v119 = vunpack.c.l.b16 %v93
    %v120 = vpack.c.b16 %v114, %v113
    %v121 = vpack.c.b16 %v116, %v115
    %v122 = vpack.c.b16 %v118, %v117
    %v123 = vpack.c.b16 %v119, %v119
    %vm124 = vcmask 261120
    %v126 = vsel %vm124, %v105, 0
    %v129 = vsel %vm124, %v120, 0
    %v132 = vsel %vm124, %v121, 0
    %v135 = vsel %vm124, %v122, 0
    %v138 = vsel %vm124, %v123, 0
    %140 = vmatprep.subr.bf16.mxu0 0
    %141 = vmatpush1.bf16.xpose.msra.mxu0 %v129
    %142 = vmatprep.subr.bf16.mxu0 0
    %143 = vmatpush1.bf16.xpose.msra.mxu0 %v132
    %144 = vmatprep.subr.bf16.mxu0 0
    %145 = vmatpush1.bf16.xpose.msra.mxu0 %v135
    %146 = vmatprep.subr.bf16.mxu0 0
    %147 = vmatpush1.bf16.xpose.msra.mxu0 %v138
    %148 = vmatprep.subr.bf16.mxu0 0
    %149 = vmatpush1.bf16.xpose.msra.mxu0 0
    %150 = vmatprep.subr.bf16.mxu0 0
    %151 = vmatpush1.bf16.xpose.msra.mxu0 0
    %152 = vmatprep.subr.bf16.mxu0 0
    %153 = vmatpush1.bf16.xpose.msra.mxu0 0
    %154 = vmatprep.subr.bf16.mxu0 0
    %155 = vmatpush1.bf16.xpose.msra.mxu0 0
    %156 = vmatprep.subr.bf16.mxu0 0
    %157 = vmatpush1.bf16.xpose.msra.mxu0 0
    %158 = vmatprep.subr.bf16.mxu0 0
    %159 = vmatpush1.bf16.xpose.msra.mxu0 0
    %160 = vmatprep.subr.bf16.mxu0 0
    %161 = vmatpush1.bf16.xpose.msra.mxu0 0
    %162 = vmatprep.subr.bf16.mxu0 0
    %163 = vmatpush1.bf16.xpose.msra.mxu0 0
    %164 = vmatprep.subr.bf16.mxu0 0
    %165 = vmatpush1.bf16.xpose.msra.mxu0 0
    %166 = vmatprep.subr.bf16.mxu0 0
    %167 = vmatpush1.bf16.xpose.msra.mxu0 0
    %168 = vmatprep.subr.bf16.mxu0 0
    %169 = vmatpush1.bf16.xpose.msra.mxu0 0
    %170 = vmatprep.subr.bf16.mxu0 0
    %171 = vmatpush1.bf16.xpose.msra.mxu0 0
    %172 = vmatprep.mubr.bf16.mxu0 0
    %173 = vmatmul.mubr.bf16.gmra.mrb[0].mxu0 %v126
    %v174 = vpop.f32.mrb[0].mxu0
    %v175 = vadd.f32 %v99, %v174
    %v176 = vpop.f32.mrb[0].mxu0
    %v177 = vpop.f32.mrb[0].mxu0
    %v178 = vadd.f32 %v99, %v177
    %v179 = vpop.f32.mrb[0].mxu0
    %180 = vdwg.mxu0
    %v181 = vld [vmem:[#allocation12] sm:$0xff]
    %v182 = vld [vmem:[#allocation12 + $0x8] sm:$0xff]
    %v183 = vld [vmem:[#allocation2] sm:$0xff]
    %v184 = vld [vmem:[#allocation2 + $0x8] sm:$0xff]
    %vm185 = vcmask 408576
    %v186 = vsel %vm185, %v175, -inf
    %187 = vmax.xlane.f32.xlu0 %v186
    %v188 = vpop.xlane.xlu0 %187
    %v189 = vsel %vm185, %v178, -inf
    %190 = vmax.xlane.f32.xlu0 %v189
    %v191 = vpop.xlane.xlu0 %190
    %v192 = vmax.f32 %v183, %v188
    %v193 = vmax.f32 %v184, %v191
    %v194 = vld [vmem:[#allocation3] sm:$0xff]
    %v195 = vld [vmem:[#allocation3 + $0x8] sm:$0xff]
    %v196 = vsub.f32 %v183, %v192
    %v197 = vsub.f32 %v184, %v193
    %v198 = vmul.f32 %v196, 1.442695
    %v199 = vpow.pop %v198
    %v200 = vmul.f32 %v197, 1.442695
    %v201 = vpow.pop %v200
    %v202 = vmul.f32 %v194, %v199
    %v203 = vmul.f32 %v195, %v201
    %205 = vset.pattern.permute.xlu0 0
    %206 = vperm.xlu0 %205, %v192
    %v207 = vpop.permute.xlu0 %206
    %210 = vset.pattern.permute.xlu0 0
    %211 = vperm.xlu0 %210, %v193
    %v212 = vpop.permute.xlu0 %211
    %v214 = vsub.f32 %v175, %v207
    %v215 = vsub.f32 %v178, %v212
    %v216 = vmul.f32 %v214, 1.442695
    %v217 = vpow.pop %v216
    %v218 = vmul.f32 %v215, 1.442695
    %v219 = vpow.pop %v218
    %v220 = vsel %vm185, %v217, 0.0
    %221 = vadd.xlane.f32.xlu0 %v220
    %v222 = vpop.xlane.xlu0 %221
    %v223 = vsel %vm185, %v219, 0.0
    %224 = vadd.xlane.f32.xlu0 %v223
    %v225 = vpop.xlane.xlu0 %224
    %v226 = vadd.f32 %v202, %v222
    %v227 = vadd.f32 %v203, %v225
    %vm228 = vcmask 7168
    %229 = vst.msk [vmem:[#allocation3] sm:$0xff] %vm228, %v226
    %230 = vst.msk [vmem:[#allocation3 + $0x8] sm:$0xff] %vm228, %v227
    %231 = vst.msk [vmem:[#allocation2] sm:$0xff] %vm228, %v192
    %232 = vst.msk [vmem:[#allocation2 + $0x8] sm:$0xff] %vm228, %v193
    %v233 = vld [vmem:[#allocation4] sm:$0xff]
    %v234 = vld [vmem:[#allocation4 + $0x8] sm:$0xff]
    %v235 = vsel %vm185, %v175, 0.0
    %236 = vadd.xlane.f32.xlu0 %v235
    %v237 = vpop.xlane.xlu0 %236
    %v238 = vsel %vm185, %v178, 0.0
    %239 = vadd.xlane.f32.xlu0 %v238
    %v240 = vpop.xlane.xlu0 %239
    %v241 = vadd.f32 %v233, %v237
    %v242 = vadd.f32 %v234, %v240
    %243 = vst.msk [vmem:[#allocation4] sm:$0xff] %vm228, %v241
    %244 = vst.msk [vmem:[#allocation4 + $0x8] sm:$0xff] %vm228, %v242
    %v245 = vlaneseq
    %v246 = vand.u32 %v245, 127
    %s247 = smul.u32 0, 50
    %v248 = vstv %s247
    %v249 = vsub.s32 %v181, %v248
    %v250 = vsub.s32 %v182, %v248
    %v251 = vld [vmem:[#allocation5] sm:$0xff]
    %v252 = vld [vmem:[#allocation5 + $0x8] sm:$0xff]
    %253 = vset.pattern.permute.xlu0 0
    %254 = vperm.xlu0 %253, %v249
    %v255 = vpop.permute.xlu0 %254
    %256 = vset.pattern.permute.xlu0 0
    %257 = vperm.xlu0 %256, %v250
    %v258 = vpop.permute.xlu0 %257
    %vm259 = vcmp.eq.s32.totalorder %v246, %v255
    %vm260 = vcmp.eq.s32.totalorder %v246, %v258
    %v261 = vsel %vm259, %v175, 0.0
    %v262 = vsel %vm260, %v178, 0.0
    %v263 = vsel %vm185, %v261, 0.0
    %264 = vadd.xlane.f32.xlu0 %v263
    %v265 = vpop.xlane.xlu0 %264
    %v266 = vsel %vm185, %v262, 0.0
    %267 = vadd.xlane.f32.xlu0 %v266
    %v268 = vpop.xlane.xlu0 %267
    %v269 = vadd.f32 %v251, %v265
    %v270 = vadd.f32 %v252, %v268
    %271 = vst.msk [vmem:[#allocation5] sm:$0xff] %vm228, %v269
    %272 = vst.msk [vmem:[#allocation5 + $0x8] sm:$0xff] %vm228, %v270
    // Predicated region
    $region38: #{_lambda_.9} parent=1 // pred_check
      %p273 = pneg %p72
    $region39: #{_lambda_.9} parent=1 // pred_check_branch
      %275 = sbr.rel (%p273) target = $region41
    $region40: #{_lambda_.9} parent=1 // pred_region
      %v276 = vld [vmem:[#allocation2] sm:$0xff]
      %v277 = vld [vmem:[#allocation2 + $0x8] sm:$0xff]
      %v278 = vld [vmem:[#allocation3] sm:$0xff]
      %v279 = vld [vmem:[#allocation3 + $0x8] sm:$0xff]
      %v280 = vlog2.pop %v278
      %v281 = vmul.f32 %v280, 0.6931472
      %v282 = vlog2.pop %v279
      %v283 = vmul.f32 %v282, 0.6931472
      %v284 = vadd.f32 %v276, %v281
      %v285 = vadd.f32 %v277, %v283
      %v286 = vld [vmem:[#allocation5] sm:$0xff]
      %v287 = vld [vmem:[#allocation5 + $0x8] sm:$0xff]
      %v288 = vsub.f32 %v286, %v284
      %v289 = vsub.f32 %v287, %v285
      %v290 = vld [vmem:[#allocation4] sm:$0xff]
      %v291 = vld [vmem:[#allocation4 + $0x8] sm:$0xff]
      %v292 = vmul.f32 %v284, 50.0
      %v293 = vmul.f32 %v285, 50.0
      %v294 = vsub.f32 %v290, %v292
      %v295 = vsub.f32 %v291, %v293
      %v296 = vmul.f32 %v288, 0.9
      %v297 = vmul.f32 %v289, 0.9
      %v298 = vsub.f32 -0.714265, %v296
      %v299 = vsub.f32 -0.714265, %v297
      %v300 = vsub.f32 %v294, %v288
      %v301 = vsub.f32 %v295, %v289
      %v302 = vmul.f32 %v300, 0.0020408162
      %v303 = vmul.f32 %v301, 0.0020408162
      %v304 = vsub.f32 %v298, %v302
      %v305 = vsub.f32 %v299, %v303
      %vm306 = vcmp.eq.s32.totalorder %v181, 0
      %vm307 = vcmp.eq.s32.totalorder %v182, 0
      %v308 = vsel %vm306, 0.0, %v304
      %v309 = vsel %vm307, 0.0, %v305
      %310 = vst.msk [vmem:[#allocation14] sm:$0xff] %vm228, %v308
      %311 = vst.msk [vmem:[#allocation14 + $0x8] sm:$0xff] %vm228, %v309
    $region41: #{_lambda_.9} parent=1 // pred_fallthru
      _
    // Predicated region
    $region42: #{_lambda_.9} parent=1 // pred_check
      _
    $region43: #{_lambda_.9} parent=1 // pred_check_branch
      %313 = sbr.rel (0) target = $region45
    $region44: #{_lambda_.9} parent=1 // pred_region
      %s315 = ssub.s32 256, 256
      %316 = vsyncadd [#allocation8], %s315
      %s317 = sshll.u32 [#allocation14], 4
      %s318 = int_to_ptr.vmem [resolvable:$true] %s317
      %323 = dma.vmem_to_hbm [thread:$0]  %s318, 256, %s4, [#allocation8], 128, 128, 8
    $region45: #{_lambda_.9} parent=1 // pred_fallthru
      _
    // Predicated region
    $region46: #{_lambda_.9} parent=1 // pred_check
      _
    $region47: #{_lambda_.9} parent=1 // pred_check_branch
      %325 = sbr.rel (0) target = $region49
    $region48: #{_lambda_.9} parent=1 // pred_region
      %326 = dma.done [#allocation8], 256
    $region49: #{_lambda_.9} parent=1 // pred_fallthru
      _
    %327 = vsyncpa [#allocation7], 1
    %328 = vsyncpa [#allocation10], 1
    %329 = vsyncpa [#allocation13], 1
    %330 = vsyncpa [#allocation8], 1

// kernel: _lambda_.5
$region0: #{_lambda_.5}
  #allocation0 [shape = 'u32[]', space=smem, size = 0x4, offset = 0x4, fixed_abs, tag = 'smem constant byte address 0x4 - core index']
  #allocation1 [shape = 'u32[144,128]{1,0:T(1,128)}', space=vmem, size = 0x12000, scoped, tag = 'internal scratch']
  %s0 = inlined_call_operand.hbm [shape: bf16[16,32], index: 0, kind: input, shape index: {}]
  %s1 = inlined_call_operand.hbm [shape: bf16[32,96], index: 1, kind: input, shape index: {}]
  %s2 = inlined_call_operand.hbm [shape: f32[1,96], index: 2, kind: input, shape index: {}]
  %s3 = inlined_call_operand.hbm [shape: bf16[32,32], index: 3, kind: input, shape index: {}]
  %s4 = inlined_call_operand.hbm [shape: f32[1,32], index: 4, kind: input, shape index: {}]
  %s5 = inlined_call_operand.hbm [shape: f32[1,32], index: 5, kind: input, shape index: {}]
  %s6 = inlined_call_operand.hbm [shape: f32[1,32], index: 6, kind: input, shape index: {}]
  %s7 = inlined_call_operand.hbm [shape: bf16[16,32], index: 7, kind: output, shape index: {}]
  %s8 = sld [smem:[#allocation0]]
  $region89: #{_lambda_.5} parent=0
    _
  %s10 = ssub.s32 1, %s8
  %s11 = scalar_select 0, %s10, %s8
  $region1: #{_lambda_.5} parent=0
    #allocation2 [shape = 'u8[4096]{0}', space=vmem, size = 0x1000, scoped, tag = 'input window, operand 0']
    #allocation3 [shape = 's32[2]{0}', space=sflag, size = 0x8, scoped, tag = 'scoped memory for _lambda_.5']
    #allocation4 [shape = 's32[2]{0}', space=sflag, size = 0x8, scoped, tag = 'scoped memory for _lambda_.5']
    #allocation5 [shape = 'u8[8192]{0}', space=vmem, size = 0x2000, scoped, tag = 'input window, operand 1, single buffered']
    #allocation6 [shape = 's32[1]{0}', space=sflag, size = 0x4, scoped, tag = 'scoped memory for _lambda_.5']
    #allocation7 [shape = 'u8[512]{0}', space=vmem, size = 0x400, scoped, tag = 'input window, operand 2, single buffered']
    #allocation8 [shape = 'u8[8192]{0}', space=vmem, size = 0x2000, scoped, tag = 'input window, operand 3, single buffered']
    #allocation9 [shape = 's32[1]{0}', space=sflag, size = 0x4, scoped, tag = 'scoped memory for _lambda_.5']
    #allocation10 [shape = 'u8[512]{0}', space=vmem, size = 0x400, scoped, tag = 'input window, operand 4, single buffered']
    #allocation11 [shape = 'u8[512]{0}', space=vmem, size = 0x400, scoped, tag = 'input window, operand 5, single buffered']
    #allocation12 [shape = 's32[1]{0}', space=sflag, size = 0x4, scoped, tag = 'scoped memory for _lambda_.5']
    #allocation13 [shape = 'u8[512]{0}', space=vmem, size = 0x400, scoped, tag = 'input window, operand 6, single buffered']
    #allocation14 [shape = 'u8[4096]{0}', space=vmem, size = 0x1000, scoped, tag = 'output window, operand 0']
    %12 = vsyncpa [#allocation3], 0
    %s13 = scalar_lea.sflag [#allocation3], 1
    %14 = vsyncpa %s13, 0
    %15 = vsyncpa [#allocation6], 0
    %16 = vsyncpa [#allocation9], 0
    %17 = vsyncpa [#allocation12], 0
    %18 = vsyncpa [#allocation4], 0
    %s19 = scalar_lea.sflag [#allocation4], 1
    %20 = vsyncpa %s19, 0
    loop: start=0, step=1, limit=4
    $region2: #{_lambda_.5} parent=1 // loop_pre_header
      _
    $region3: #{_lambda_.5} parent=1 // loop_header
      %s22 = sphi 0, %s26
      %p23 = scmp.ge.s32.totalorder %s22, 4
      %s32 = sphi 0, %s34
      %s35 = sphi 0, %s32
      %s36 = sphi 0, %s35
      %s52 = sphi 0, %s36
      %s56 = sphi 0, %s56
      %s58 = sphi 0, %s56
      %s59 = sphi 0, %s58
      %s73 = sphi 0, %s59
      %s77 = sphi 0, %s77
      %s79 = sphi 0, %s77
      %s80 = sphi 0, %s79
      %s94 = sphi 0, %s80
      %s98 = sphi 0, %s98
      %s100 = sphi 0, %s98
      %s101 = sphi 0, %s100
      %s115 = sphi 0, %s101
      %s119 = sphi 0, %s119
      %s121 = sphi 0, %s119
      %s122 = sphi 0, %s121
      %s136 = sphi 0, %s122
      %s140 = sphi 0, %s140
      %s142 = sphi 0, %s140
      %s143 = sphi 0, %s142
      %s157 = sphi 0, %s143
      %s161 = sphi 0, %s161
      %s163 = sphi 0, %s161
      %s164 = sphi 0, %s163
      %s178 = sphi 0, %s164
      %s184 = sphi 0, %s186
      %s187 = sphi 0, %s184
      %s188 = sphi 0, %s187
      %s204 = sphi 0, %s188
    $region4: #{_lambda_.5} parent=1 // loop_header_branch
      %25 = sbr.rel (%p23) target = $region8
    $region5: #{_lambda_.5} parent=1 // loop_body
      %s27 = ssub.s32 %s22, 1
      %s28 = ssub.s32 %s22, 2
      %s29 = sadd.s32 %s22, 1
      %s30 = ssub.s32 %s22, %s29
      %p31 = scmp.eq.s32.totalorder %s30, 0
      %s33 = sadd.s32 %s32, 1
      %s34 = scalar_select %p31, %s32, %s33
      %p37 = pneg %p31
      %p38 = scmp.eq.s32.totalorder %s22, 1
      %p39 = por %p37, %p38
      %p40 = scmp.ne.s32.totalorder %s32, %s35
      %p41 = scmp.eq.s32.totalorder %s22, 0
      %p42 = por %p40, %p41
      %p43 = scmp.ne.s32.totalorder %s32, %s35
      %p44 = scmp.eq.s32.totalorder %s27, 1
      %p45 = por %p43, %p44
      %p46 = scmp.ne.s32.totalorder %s35, %s36
      %p47 = scmp.eq.s32.totalorder %s27, 0
      %p48 = por %p46, %p47
      %p49 = scmp.ne.s32.totalorder %s35, %s36
      %p50 = scmp.eq.s32.totalorder %s28, 1
      %p51 = por %p49, %p50
      %p53 = scmp.ne.s32.totalorder %s36, %s52
      %p54 = scmp.eq.s32.totalorder %s28, 0
      %p55 = por %p53, %p54
      %s57 = sadd.s32 %s56, 1
      %p60 = scmp.eq.s32.totalorder %s22, 1
      %p61 = scmp.ne.s32.totalorder %s56, %s58
      %p62 = scmp.eq.s32.totalorder %s22, 0
      %p63 = por %p61, %p62
      %p64 = scmp.ne.s32.totalorder %s56, %s58
      %p65 = scmp.eq.s32.totalorder %s27, 1
      %p66 = por %p64, %p65
      %p67 = scmp.ne.s32.totalorder %s58, %s59
      %p68 = scmp.eq.s32.totalorder %s27, 0
      %p69 = por %p67, %p68
      %p70 = scmp.ne.s32.totalorder %s58, %s59
      %p71 = scmp.eq.s32.totalorder %s28, 1
      %p72 = por %p70, %p71
      %p74 = scmp.ne.s32.totalorder %s59, %s73
      %p75 = scmp.eq.s32.totalorder %s28, 0
      %p76 = por %p74, %p75
      %s78 = sadd.s32 %s77, 1
      %p81 = scmp.eq.s32.totalorder %s22, 1
      %p82 = scmp.ne.s32.totalorder %s77, %s79
      %p83 = scmp.eq.s32.totalorder %s22, 0
      %p84 = por %p82, %p83
      %p85 = scmp.ne.s32.totalorder %s77, %s79
      %p86 = scmp.eq.s32.totalorder %s27, 1
      %p87 = por %p85, %p86
      %p88 = scmp.ne.s32.totalorder %s79, %s80
      %p89 = scmp.eq.s32.totalorder %s27, 0
      %p90 = por %p88, %p89
      %p91 = scmp.ne.s32.totalorder %s79, %s80
      %p92 = scmp.eq.s32.totalorder %s28, 1
      %p93 = por %p91, %p92
      %p95 = scmp.ne.s32.totalorder %s80, %s94
      %p96 = scmp.eq.s32.totalorder %s28, 0
      %p97 = por %p95, %p96
      %s99 = sadd.s32 %s98, 1
      %p102 = scmp.eq.s32.totalorder %s22, 1
      %p103 = scmp.ne.s32.totalorder %s98, %s100
      %p104 = scmp.eq.s32.totalorder %s22, 0
      %p105 = por %p103, %p104
      %p106 = scmp.ne.s32.totalorder %s98, %s100
      %p107 = scmp.eq.s32.totalorder %s27, 1
      %p108 = por %p106, %p107
      %p109 = scmp.ne.s32.totalorder %s100, %s101
      %p110 = scmp.eq.s32.totalorder %s27, 0
      %p111 = por %p109, %p110
      %p112 = scmp.ne.s32.totalorder %s100, %s101
      %p113 = scmp.eq.s32.totalorder %s28, 1
      %p114 = por %p112, %p113
      %p116 = scmp.ne.s32.totalorder %s101, %s115
      %p117 = scmp.eq.s32.totalorder %s28, 0
      %p118 = por %p116, %p117
      %s120 = sadd.s32 %s119, 1
      %p123 = scmp.eq.s32.totalorder %s22, 1
      %p124 = scmp.ne.s32.totalorder %s119, %s121
      %p125 = scmp.eq.s32.totalorder %s22, 0
      %p126 = por %p124, %p125
      %p127 = scmp.ne.s32.totalorder %s119, %s121
      %p128 = scmp.eq.s32.totalorder %s27, 1
      %p129 = por %p127, %p128
      %p130 = scmp.ne.s32.totalorder %s121, %s122
      %p131 = scmp.eq.s32.totalorder %s27, 0
      %p132 = por %p130, %p131
      %p133 = scmp.ne.s32.totalorder %s121, %s122
      %p134 = scmp.eq.s32.totalorder %s28, 1
      %p135 = por %p133, %p134
      %p137 = scmp.ne.s32.totalorder %s122, %s136
      %p138 = scmp.eq.s32.totalorder %s28, 0
      %p139 = por %p137, %p138
      %s141 = sadd.s32 %s140, 1
      %p144 = scmp.eq.s32.totalorder %s22, 1
      %p145 = scmp.ne.s32.totalorder %s140, %s142
      %p146 = scmp.eq.s32.totalorder %s22, 0
      %p147 = por %p145, %p146
      %p148 = scmp.ne.s32.totalorder %s140, %s142
      %p149 = scmp.eq.s32.totalorder %s27, 1
      %p150 = por %p148, %p149
      %p151 = scmp.ne.s32.totalorder %s142, %s143
      %p152 = scmp.eq.s32.totalorder %s27, 0
      %p153 = por %p151, %p152
      %p154 = scmp.ne.s32.totalorder %s142, %s143
      %p155 = scmp.eq.s32.totalorder %s28, 1
      %p156 = por %p154, %p155
      %p158 = scmp.ne.s32.totalorder %s143, %s157
      %p159 = scmp.eq.s32.totalorder %s28, 0
      %p160 = por %p158, %p159
      %s162 = sadd.s32 %s161, 1
      %p165 = scmp.eq.s32.totalorder %s22, 1
      %p166 = scmp.ne.s32.totalorder %s161, %s163
      %p167 = scmp.eq.s32.totalorder %s22, 0
      %p168 = por %p166, %p167
      %p169 = scmp.ne.s32.totalorder %s161, %s163
      %p170 = scmp.eq.s32.totalorder %s27, 1
      %p171 = por %p169, %p170
      %p172 = scmp.ne.s32.totalorder %s163, %s164
      %p173 = scmp.eq.s32.totalorder %s27, 0
      %p174 = por %p172, %p173
      %p175 = scmp.ne.s32.totalorder %s163, %s164
      %p176 = scmp.eq.s32.totalorder %s28, 1
      %p177 = por %p175, %p176
      %p179 = scmp.ne.s32.totalorder %s164, %s178
      %p180 = scmp.eq.s32.totalorder %s28, 0
      %p181 = por %p179, %p180
      %s182 = ssub.s32 %s22, %s29
      %p183 = scmp.eq.s32.totalorder %s182, 0
      %s185 = sadd.s32 %s184, 1
      %s186 = scalar_select %p183, %s184, %s185
      %p189 = pneg %p183
      %p190 = scmp.eq.s32.totalorder %s22, 1
      %p191 = por %p189, %p190
      %p192 = scmp.ne.s32.totalorder %s184, %s187
      %p193 = scmp.eq.s32.totalorder %s22, 0
      %p194 = por %p192, %p193
      %p195 = scmp.ne.s32.totalorder %s184, %s187
      %p196 = scmp.eq.s32.totalorder %s27, 1
      %p197 = por %p195, %p196
      %p198 = scmp.ne.s32.totalorder %s187, %s188
      %p199 = scmp.eq.s32.totalorder %s27, 0
      %p200 = por %p198, %p199
      %p201 = scmp.ne.s32.totalorder %s187, %s188
      %p202 = scmp.eq.s32.totalorder %s28, 1
      %p203 = por %p201, %p202
      %p205 = scmp.ne.s32.totalorder %s188, %s204
      %p206 = scmp.eq.s32.totalorder %s28, 0
      %p207 = por %p205, %p206
      %p208 = scmp.le.s32.totalorder 1, %s22
      %p209 = scmp.lt.s32.totalorder %s22, 3
      %p210 = pnand %p208, %p209
      %p211 = pneg %p210
      // Predicated region
      $region9: #{_lambda_.5} parent=5 // pred_check
        _
      $region10: #{_lambda_.5} parent=5 // pred_check_branch
        %213 = sbr.rel (%p210) target = $region12
      $region11: #{_lambda_.5} parent=5 // pred_region
        %s214 = ssub.s32 %s22, 1
        // Predicated region
        $region13: #{_lambda_.5} parent=11 // pred_check
          %p215 = pneg %p69
        $region14: #{_lambda_.5} parent=11 // pred_check_branch
          %217 = sbr.rel (%p215) target = $region16
        $region15: #{_lambda_.5} parent=11 // pred_region
          %s219 = ssub.s32 256, 256
          %220 = vsyncadd [#allocation6], %s219
          %s221 = sshll.u32 [#allocation5], 4
          %s222 = int_to_ptr.vmem [resolvable:$true] %s221
          %227 = dma.hbm_to_vmem [thread:$0]  %s1, 256, %s222, [#allocation6], 64, 64, 4
        $region16: #{_lambda_.5} parent=11 // pred_fallthru
          _
        // Predicated region
        $region17: #{_lambda_.5} parent=11 // pred_check
          %p228 = pneg %p90
        $region18: #{_lambda_.5} parent=11 // pred_check_branch
          %230 = sbr.rel (%p228) target = $region20
        $region19: #{_lambda_.5} parent=11 // pred_region
          %s232 = ssub.s32 16, 16
          %233 = vsyncadd [#allocation6], %s232
          %s235 = sshll.u32 [#allocation7], 4
          %s236 = int_to_ptr.vmem [resolvable:$true] %s235
          %238 = dma.hbm_to_vmem [thread:$0]  %s2, 16, %s236, [#allocation6]
        $region20: #{_lambda_.5} parent=11 // pred_fallthru
          _
        // Predicated region
        $region21: #{_lambda_.5} parent=11 // pred_check
          %p239 = pneg %p111
        $region22: #{_lambda_.5} parent=11 // pred_check_branch
          %241 = sbr.rel (%p239) target = $region24
        $region23: #{_lambda_.5} parent=11 // pred_region
          %s243 = ssub.s32 256, 256
          %244 = vsyncadd [#allocation9], %s243
          %s245 = sshll.u32 [#allocation8], 4
          %s246 = int_to_ptr.vmem [resolvable:$true] %s245
          %251 = dma.hbm_to_vmem [thread:$0]  %s3, 256, %s246, [#allocation9], 64, 64, 4
        $region24: #{_lambda_.5} parent=11 // pred_fallthru
          _
        // Predicated region
        $region25: #{_lambda_.5} parent=11 // pred_check
          %p252 = pneg %p132
        $region26: #{_lambda_.5} parent=11 // pred_check_branch
          %254 = sbr.rel (%p252) target = $region28
        $region27: #{_lambda_.5} parent=11 // pred_region
          %s256 = ssub.s32 16, 16
          %257 = vsyncadd [#allocation9], %s256
          %s259 = sshll.u32 [#allocation10], 4
          %s260 = int_to_ptr.vmem [resolvable:$true] %s259
          %262 = dma.hbm_to_vmem [thread:$0]  %s4, 16, %s260, [#allocation9]
        $region28: #{_lambda_.5} parent=11 // pred_fallthru
          _
        // Predicated region
        $region29: #{_lambda_.5} parent=11 // pred_check
          %p263 = pneg %p153
        $region30: #{_lambda_.5} parent=11 // pred_check_branch
          %265 = sbr.rel (%p263) target = $region32
        $region31: #{_lambda_.5} parent=11 // pred_region
          %s267 = ssub.s32 16, 16
          %268 = vsyncadd [#allocation12], %s267
          %s270 = sshll.u32 [#allocation11], 4
          %s271 = int_to_ptr.vmem [resolvable:$true] %s270
          %273 = dma.hbm_to_vmem [thread:$0]  %s5, 16, %s271, [#allocation12]
        $region32: #{_lambda_.5} parent=11 // pred_fallthru
          _
        // Predicated region
        $region33: #{_lambda_.5} parent=11 // pred_check
          %p274 = pneg %p174
        $region34: #{_lambda_.5} parent=11 // pred_check_branch
          %276 = sbr.rel (%p274) target = $region36
        $region35: #{_lambda_.5} parent=11 // pred_region
          %s278 = ssub.s32 16, 16
          %279 = vsyncadd [#allocation12], %s278
          %s281 = sshll.u32 [#allocation13], 4
          %s282 = int_to_ptr.vmem [resolvable:$true] %s281
          %284 = dma.hbm_to_vmem [thread:$0]  %s6, 16, %s282, [#allocation12]
        $region36: #{_lambda_.5} parent=11 // pred_fallthru
          _
      $region12: #{_lambda_.5} parent=5 // pred_fallthru
        _
      %p285 = scmp.lt.s32.totalorder %s22, 2
      // Predicated region
      $region37: #{_lambda_.5} parent=5 // pred_check
        %p286 = pneg %p285
      $region38: #{_lambda_.5} parent=5 // pred_check_branch
        %288 = sbr.rel (%p286) target = $region40
      $region39: #{_lambda_.5} parent=5 // pred_region
        // Predicated region
        $region41: #{_lambda_.5} parent=39 // pred_check
          %p289 = pneg %p42
        $region42: #{_lambda_.5} parent=39 // pred_check_branch
          %291 = sbr.rel (%p289) target = $region44
        $region43: #{_lambda_.5} parent=39 // pred_region
          %s292 = sand.u32 %s32, 1
          %s293 = scalar_lea.sflag [#allocation3], %s292
          %s294 = sand.u32 %s32, 1
          %s295 = smul.addr %s294, 4
          %s296 = scalar_lea.vmem [#allocation2], %s295
          %s298 = ssub.s32 64, 64
          %299 = vsyncadd %s293, %s298
          %s300 = smul.addr %s22, 64
          %s301 = scalar_lea.hbm %s0, %s300
          %s303 = sshll.u32 %s296, 4
          %s304 = int_to_ptr.vmem [resolvable:$true] %s303
          %306 = dma.hbm_to_vmem [thread:$0]  %s301, 64, %s304, %s293
        $region44: #{_lambda_.5} parent=39 // pred_fallthru
          _
      $region40: #{_lambda_.5} parent=5 // pred_fallthru
        _
      %p307 = scmp.le.s32.totalorder 1, %s22
      %p308 = scmp.lt.s32.totalorder %s22, 3
      %p309 = pnand %p307, %p308
      %p310 = pneg %p309
      // Predicated region
      $region45: #{_lambda_.5} parent=5 // pred_check
        _
      $region46: #{_lambda_.5} parent=5 // pred_check_branch
        %312 = sbr.rel (%p309) target = $region48
      $region47: #{_lambda_.5} parent=5 // pred_region
        %s313 = ssub.s32 %s22, 1
        %s314 = sand.u32 %s35, 1
        %s315 = scalar_lea.sflag [#allocation3], %s314
        %s316 = sand.u32 %s35, 1
        %s317 = smul.addr %s316, 4
        %s318 = scalar_lea.vmem [#allocation2], %s317
        // Predicated region
        $region49: #{_lambda_.5} parent=47 // pred_check
          %p319 = pneg %p48
        $region50: #{_lambda_.5} parent=47 // pred_check_branch
          %321 = sbr.rel (%p319) target = $region52
        $region51: #{_lambda_.5} parent=47 // pred_region
          %322 = dma.done %s315, 64
        $region52: #{_lambda_.5} parent=47 // pred_fallthru
          _
        // Predicated region
        $region53: #{_lambda_.5} parent=47 // pred_check
          %p323 = pneg %p69
        $region54: #{_lambda_.5} parent=47 // pred_check_branch
          %325 = sbr.rel (%p323) target = $region56
        $region55: #{_lambda_.5} parent=47 // pred_region
          %326 = dma.done [#allocation6], 256
        $region56: #{_lambda_.5} parent=47 // pred_fallthru
          _
        // Predicated region
        $region57: #{_lambda_.5} parent=47 // pred_check
          %p327 = pneg %p90
        $region58: #{_lambda_.5} parent=47 // pred_check_branch
          %329 = sbr.rel (%p327) target = $region60
        $region59: #{_lambda_.5} parent=47 // pred_region
          %330 = dma.done [#allocation6], 16
        $region60: #{_lambda_.5} parent=47 // pred_fallthru
          _
        // Predicated region
        $region61: #{_lambda_.5} parent=47 // pred_check
          %p331 = pneg %p111
        $region62: #{_lambda_.5} parent=47 // pred_check_branch
          %333 = sbr.rel (%p331) target = $region64
        $region63: #{_lambda_.5} parent=47 // pred_region
          %334 = dma.done [#allocation9], 256
        $region64: #{_lambda_.5} parent=47 // pred_fallthru
          _
        // Predicated region
        $region65: #{_lambda_.5} parent=47 // pred_check
          %p335 = pneg %p132
        $region66: #{_lambda_.5} parent=47 // pred_check_branch
          %337 = sbr.rel (%p335) target = $region68
        $region67: #{_lambda_.5} parent=47 // pred_region
          %338 = dma.done [#allocation9], 16
        $region68: #{_lambda_.5} parent=47 // pred_fallthru
          _
        // Predicated region
        $region69: #{_lambda_.5} parent=47 // pred_check
          %p339 = pneg %p153
        $region70: #{_lambda_.5} parent=47 // pred_check_branch
          %341 = sbr.rel (%p339) target = $region72
        $region71: #{_lambda_.5} parent=47 // pred_region
          %342 = dma.done [#allocation12], 16
        $region72: #{_lambda_.5} parent=47 // pred_fallthru
          _
        // Predicated region
        $region73: #{_lambda_.5} parent=47 // pred_check
          %p343 = pneg %p174
        $region74: #{_lambda_.5} parent=47 // pred_check_branch
          %345 = sbr.rel (%p343) target = $region76
        $region75: #{_lambda_.5} parent=47 // pred_region
          %346 = dma.done [#allocation12], 16
        $region76: #{_lambda_.5} parent=47 // pred_fallthru
          _
        %s347 = sand.u32 %s35, 1
        %s348 = scalar_lea.sflag [#allocation3], %s347
        %s349 = sand.u32 %s35, 1
        %s350 = smul.addr %s349, 4
        %s351 = scalar_lea.vmem [#allocation2], %s350
        %p352 = pneg %p48
        %p353 = pneg %p45
        %p354 = pneg %p69
        %p355 = pneg %p66
        %p356 = pneg %p90
        %p357 = pneg %p87
        %p358 = pneg %p111
        %p359 = pneg %p108
        %p360 = pneg %p132
        %p361 = pneg %p129
        %p362 = pneg %p153
        %p363 = pneg %p150
        %p364 = pneg %p174
        %p365 = pneg %p171
        %p366 = pneg %p200
        %p367 = pneg %p197
        %s368 = sand.u32 %s187, 1
        %s369 = scalar_lea.sflag [#allocation4], %s368
        %s370 = sand.u32 %s187, 1
        %s371 = smul.addr %s370, 4
        %s372 = scalar_lea.vmem [#allocation14], %s371
        %v374 = vld [vmem:[%s318] sm:$0xf]
        %v375 = vunpack.c.l.bf16 %v374
        %v376 = vld [vmem:[#allocation5] sm:$0xf]
        %v377 = vld [vmem:[#allocation5 + $0x4] sm:$0xf]
        %v378 = vld [vmem:[#allocation5 + $0x8] sm:$0xf]
        %v379 = vld [vmem:[#allocation5 + $0xc] sm:$0xf]
        %v380 = vld [vmem:[#allocation7] sm:$0x1]
        %v382 = vlaneseq
        %v383 = vshrl.u32 %v382, 7
        %v384 = vsub.s32 0, %v383
        %v385 = vrot.slane %v380, %v384
        %v391 = vunpack.c.l.b16 %v376
        %v392 = vunpack.c.l.b16 %v377
        %v393 = vunpack.c.l.b16 %v378
        %v394 = vunpack.c.l.b16 %v379
        %v395 = vpack.c.b16 %v392, %v391
        %v396 = vpack.c.b16 %v394, %v393
        %vm399 = vcmask 261120
        %v401 = vsel %vm399, %v374, 0
        %403 = vmatprep.subr.bf16.mxu0 0
        %404 = vmatpush1.bf16.msra.mxu0 %v395
        %405 = vmatprep.subr.bf16.mxu0 0
        %406 = vmatpush1.bf16.msra.mxu0 %v396
        %407 = vmatprep.subr.bf16.mxu0 0
        %408 = vmatpush1.bf16.msra.mxu0 0
        %409 = vmatprep.subr.bf16.mxu0 0
        %410 = vmatpush1.bf16.msra.mxu0 0
        %411 = vmatprep.subr.bf16.mxu0 0
        %412 = vmatpush1.bf16.msra.mxu0 0
        %413 = vmatprep.subr.bf16.mxu0 0
        %414 = vmatpush1.bf16.msra.mxu0 0
        %415 = vmatprep.subr.bf16.mxu0 0
        %416 = vmatpush1.bf16.msra.mxu0 0
        %417 = vmatprep.subr.bf16.mxu0 0
        %418 = vmatpush1.bf16.msra.mxu0 0
        %419 = vmatprep.subr.bf16.mxu0 0
        %420 = vmatpush1.bf16.msra.mxu0 0
        %421 = vmatprep.subr.bf16.mxu0 0
        %422 = vmatpush1.bf16.msra.mxu0 0
        %423 = vmatprep.subr.bf16.mxu0 0
        %424 = vmatpush1.bf16.msra.mxu0 0
        %425 = vmatprep.subr.bf16.mxu0 0
        %426 = vmatpush1.bf16.msra.mxu0 0
        %427 = vmatprep.subr.bf16.mxu0 0
        %428 = vmatpush1.bf16.msra.mxu0 0
        %429 = vmatprep.subr.bf16.mxu0 0
        %430 = vmatpush1.bf16.msra.mxu0 0
        %431 = vmatprep.subr.bf16.mxu0 0
        %432 = vmatpush1.bf16.msra.mxu0 0
        %433 = vmatprep.subr.bf16.mxu0 0
        %434 = vmatpush1.bf16.msra.mxu0 0
        %435 = vmatprep.mubr.bf16.mxu0 0
        %436 = vmatmul.mubr.bf16.gmra.mrb[0].mxu0 %v401
        %v437 = vpop.f32.mrb[0].mxu0
        %v438 = vadd.f32 %v385, %v437
        %v439 = vpop.f32.mrb[0].mxu0
        %v440 = vpop.f32.mrb[0].mxu0
        %v441 = vpop.f32.mrb[0].mxu0
        %442 = vdwg.mxu0
        %v443 = vlaneseq
        %v444 = vshrl.u32 %v443, 7
        %v445 = vlaneseq
        %v446 = vand.u32 %v445, 127
        %vm447 = vcmp.ge.s32.totalorder %v444, %v446
        %v448 = vpack.c.bf16 %v438, %v438
        %450 = vrot.lane.b32.xlu0 %v448, 96
        %v451 = vpop.permute.xlu0 %450
        %vm452 = vcmask 64512
        %v454 = vsel %vm452, %v448, 0
        %v457 = vsel %vm452, %v451, 0
        %459 = vmatprep.subr.bf16.mxu0 0
        %460 = vmatpush1.bf16.xpose.msra.mxu0 %v457
        %461 = vmatprep.subr.bf16.mxu0 0
        %462 = vmatpush1.bf16.xpose.msra.mxu0 0
        %463 = vmatprep.subr.bf16.mxu0 0
        %464 = vmatpush1.bf16.xpose.msra.mxu0 0
        %465 = vmatprep.subr.bf16.mxu0 0
        %466 = vmatpush1.bf16.xpose.msra.mxu0 0
        %467 = vmatprep.subr.bf16.mxu0 0
        %468 = vmatpush1.bf16.xpose.msra.mxu0 0
        %469 = vmatprep.subr.bf16.mxu0 0
        %470 = vmatpush1.bf16.xpose.msra.mxu0 0
        %471 = vmatprep.subr.bf16.mxu0 0
        %472 = vmatpush1.bf16.xpose.msra.mxu0 0
        %473 = vmatprep.subr.bf16.mxu0 0
        %474 = vmatpush1.bf16.xpose.msra.mxu0 0
        %475 = vmatprep.subr.bf16.mxu0 0
        %476 = vmatpush1.bf16.xpose.msra.mxu0 0
        %477 = vmatprep.subr.bf16.mxu0 0
        %478 = vmatpush1.bf16.xpose.msra.mxu0 0
        %479 = vmatprep.subr.bf16.mxu0 0
        %480 = vmatpush1.bf16.xpose.msra.mxu0 0
        %481 = vmatprep.subr.bf16.mxu0 0
        %482 = vmatpush1.bf16.xpose.msra.mxu0 0
        %483 = vmatprep.subr.bf16.mxu0 0
        %484 = vmatpush1.bf16.xpose.msra.mxu0 0
        %485 = vmatprep.subr.bf16.mxu0 0
        %486 = vmatpush1.bf16.xpose.msra.mxu0 0
        %487 = vmatprep.subr.bf16.mxu0 0
        %488 = vmatpush1.bf16.xpose.msra.mxu0 0
        %489 = vmatprep.subr.bf16.mxu0 0
        %490 = vmatpush1.bf16.xpose.msra.mxu0 0
        %491 = vmatprep.mubr.bf16.mxu0 0
        %492 = vmatmul.mubr.bf16.gmra.mrb[0].mxu0 %v454
        %v493 = vpop.f32.mrb[0].mxu0
        %v494 = vadd.f32 0.0, %v493
        %v495 = vpop.f32.mrb[0].mxu0
        %v496 = vpop.f32.mrb[0].mxu0
        %v497 = vpop.f32.mrb[0].mxu0
        %498 = vdwg.mxu0
        %v499 = vsel %vm447, %v494, -1e+30
        %v500 = vsel %vm452, %v499, -inf
        %501 = vmax.xlane.f32.xlu0 %v500
        %v502 = vpop.xlane.xlu0 %501
        %v503 = vsub.f32 %v499, %v502
        %v504 = vmul.f32 %v503, 1.442695
        %v505 = vpow.pop %v504
        %v506 = vsel %vm452, %v505, 0.0
        %507 = vadd.xlane.f32.xlu0 %v506
        %v508 = vpop.xlane.xlu0 %507
        %v509 = vrcp.pop %v508
        %v510 = vmul.f32 %v505, %v509
        %v511 = vpack.c.bf16 %v510, %v510
        %512 = vrot.lane.b32.xlu0 %v448, 64
        %v513 = vpop.permute.xlu0 %512
        %v515 = vsel %vm452, %v511, 0
        %vm517 = vcmask 1043456
        %v519 = vsel %vm517, %v513, 0
        %521 = vmatprep.subr.bf16.mxu0 0
        %522 = vmatpush1.bf16.msra.mxu0 %v519
        %523 = vmatprep.subr.bf16.mxu0 0
        %524 = vmatpush1.bf16.msra.mxu0 0
        %525 = vmatprep.subr.bf16.mxu0 0
        %526 = vmatpush1.bf16.msra.mxu0 0
        %527 = vmatprep.subr.bf16.mxu0 0
        %528 = vmatpush1.bf16.msra.mxu0 0
        %529 = vmatprep.subr.bf16.mxu0 0
        %530 = vmatpush1.bf16.msra.mxu0 0
        %531 = vmatprep.subr.bf16.mxu0 0
        %532 = vmatpush1.bf16.msra.mxu0 0
        %533 = vmatprep.subr.bf16.mxu0 0
        %534 = vmatpush1.bf16.msra.mxu0 0
        %535 = vmatprep.subr.bf16.mxu0 0
        %536 = vmatpush1.bf16.msra.mxu0 0
        %537 = vmatprep.subr.bf16.mxu0 0
        %538 = vmatpush1.bf16.msra.mxu0 0
        %539 = vmatprep.subr.bf16.mxu0 0
        %540 = vmatpush1.bf16.msra.mxu0 0
        %541 = vmatprep.subr.bf16.mxu0 0
        %542 = vmatpush1.bf16.msra.mxu0 0
        %543 = vmatprep.subr.bf16.mxu0 0
        %544 = vmatpush1.bf16.msra.mxu0 0
        %545 = vmatprep.subr.bf16.mxu0 0
        %546 = vmatpush1.bf16.msra.mxu0 0
        %547 = vmatprep.subr.bf16.mxu0 0
        %548 = vmatpush1.bf16.msra.mxu0 0
        %549 = vmatprep.subr.bf16.mxu0 0
        %550 = vmatpush1.bf16.msra.mxu0 0
        %551 = vmatprep.subr.bf16.mxu0 0
        %552 = vmatpush1.bf16.msra.mxu0 0
        %553 = vmatprep.mubr.bf16.mxu0 0
        %554 = vmatmul.mubr.bf16.gmra.mrb[0].mxu0 %v515
        %v555 = vpop.f32.mrb[0].mxu0
        %v556 = vadd.f32 0.0, %v555
        %v557 = vpop.f32.mrb[0].mxu0
        %v558 = vpop.f32.mrb[0].mxu0
        %v559 = vpop.f32.mrb[0].mxu0
        %560 = vdwg.mxu0
        %561 = vrot.lane.b32.xlu0 %v448, 120
        %v562 = vpop.permute.xlu0 %561
        %563 = vrot.lane.b32.xlu0 %v448, 88
        %v564 = vpop.permute.xlu0 %563
        %v566 = vsel %vm452, %v562, 0
        %v569 = vsel %vm452, %v564, 0
        %571 = vmatprep.subr.bf16.mxu0 0
        %572 = vmatpush1.bf16.xpose.msra.mxu0 %v569
        %573 = vmatprep.subr.bf16.mxu0 0
        %574 = vmatpush1.bf16.xpose.msra.mxu0 0
        %575 = vmatprep.subr.bf16.mxu0 0
        %576 = vmatpush1.bf16.xpose.msra.mxu0 0
        %577 = vmatprep.subr.bf16.mxu0 0
        %578 = vmatpush1.bf16.xpose.msra.mxu0 0
        %579 = vmatprep.subr.bf16.mxu0 0
        %580 = vmatpush1.bf16.xpose.msra.mxu0 0
        %581 = vmatprep.subr.bf16.mxu0 0
        %582 = vmatpush1.bf16.xpose.msra.mxu0 0
        %583 = vmatprep.subr.bf16.mxu0 0
        %584 = vmatpush1.bf16.xpose.msra.mxu0 0
        %585 = vmatprep.subr.bf16.mxu0 0
        %586 = vmatpush1.bf16.xpose.msra.mxu0 0
        %587 = vmatprep.subr.bf16.mxu0 0
        %588 = vmatpush1.bf16.xpose.msra.mxu0 0
        %589 = vmatprep.subr.bf16.mxu0 0
        %590 = vmatpush1.bf16.xpose.msra.mxu0 0
        %591 = vmatprep.subr.bf16.mxu0 0
        %592 = vmatpush1.bf16.xpose.msra.mxu0 0
        %593 = vmatprep.subr.bf16.mxu0 0
        %594 = vmatpush1.bf16.xpose.msra.mxu0 0
        %595 = vmatprep.subr.bf16.mxu0 0
        %596 = vmatpush1.bf16.xpose.msra.mxu0 0
        %597 = vmatprep.subr.bf16.mxu0 0
        %598 = vmatpush1.bf16.xpose.msra.mxu0 0
        %599 = vmatprep.subr.bf16.mxu0 0
        %600 = vmatpush1.bf16.xpose.msra.mxu0 0
        %601 = vmatprep.subr.bf16.mxu0 0
        %602 = vmatpush1.bf16.xpose.msra.mxu0 0
        %603 = vmatprep.mubr.bf16.mxu0 0
        %604 = vmatmul.mubr.bf16.gmra.mrb[0].mxu0 %v566
        %v605 = vpop.f32.mrb[0].mxu0
        %v606 = vadd.f32 0.0, %v605
        %v607 = vpop.f32.mrb[0].mxu0
        %v608 = vpop.f32.mrb[0].mxu0
        %v609 = vpop.f32.mrb[0].mxu0
        %610 = vdwg.mxu0
        %v611 = vsel %vm447, %v606, -1e+30
        %v612 = vsel %vm452, %v611, -inf
        %613 = vmax.xlane.f32.xlu0 %v612
        %v614 = vpop.xlane.xlu0 %613
        %v615 = vsub.f32 %v611, %v614
        %v616 = vmul.f32 %v615, 1.442695
        %v617 = vpow.pop %v616
        %v618 = vsel %vm452, %v617, 0.0
        %619 = vadd.xlane.f32.xlu0 %v618
        %v620 = vpop.xlane.xlu0 %619
        %v621 = vrcp.pop %v620
        %v622 = vmul.f32 %v617, %v621
        %v623 = vpack.c.bf16 %v622, %v622
        %624 = vrot.lane.b32.xlu0 %v448, 56
        %v625 = vpop.permute.xlu0 %624
        %v627 = vsel %vm452, %v623, 0
        %v630 = vsel %vm517, %v625, 0
        %632 = vmatprep.subr.bf16.mxu0 0
        %633 = vmatpush1.bf16.msra.mxu0 %v630
        %634 = vmatprep.subr.bf16.mxu0 0
        %635 = vmatpush1.bf16.msra.mxu0 0
        %636 = vmatprep.subr.bf16.mxu0 0
        %637 = vmatpush1.bf16.msra.mxu0 0
        %638 = vmatprep.subr.bf16.mxu0 0
        %639 = vmatpush1.bf16.msra.mxu0 0
        %640 = vmatprep.subr.bf16.mxu0 0
        %641 = vmatpush1.bf16.msra.mxu0 0
        %642 = vmatprep.subr.bf16.mxu0 0
        %643 = vmatpush1.bf16.msra.mxu0 0
        %644 = vmatprep.subr.bf16.mxu0 0
        %645 = vmatpush1.bf16.msra.mxu0 0
        %646 = vmatprep.subr.bf16.mxu0 0
        %647 = vmatpush1.bf16.msra.mxu0 0
        %648 = vmatprep.subr.bf16.mxu0 0
        %649 = vmatpush1.bf16.msra.mxu0 0
        %650 = vmatprep.subr.bf16.mxu0 0
        %651 = vmatpush1.bf16.msra.mxu0 0
        %652 = vmatprep.subr.bf16.mxu0 0
        %653 = vmatpush1.bf16.msra.mxu0 0
        %654 = vmatprep.subr.bf16.mxu0 0
        %655 = vmatpush1.bf16.msra.mxu0 0
        %656 = vmatprep.subr.bf16.mxu0 0
        %657 = vmatpush1.bf16.msra.mxu0 0
        %658 = vmatprep.subr.bf16.mxu0 0
        %659 = vmatpush1.bf16.msra.mxu0 0
        %660 = vmatprep.subr.bf16.mxu0 0
        %661 = vmatpush1.bf16.msra.mxu0 0
        %662 = vmatprep.subr.bf16.mxu0 0
        %663 = vmatpush1.bf16.msra.mxu0 0
        %664 = vmatprep.mubr.bf16.mxu0 0
        %665 = vmatmul.mubr.bf16.gmra.mrb[0].mxu0 %v627
        %v666 = vpop.f32.mrb[0].mxu0
        %v667 = vadd.f32 0.0, %v666
        %v668 = vpop.f32.mrb[0].mxu0
        %v669 = vpop.f32.mrb[0].mxu0
        %v670 = vpop.f32.mrb[0].mxu0
        %671 = vdwg.mxu0
        %672 = vrot.lane.b32.xlu0 %v448, 112
        %v673 = vpop.permute.xlu0 %672
        %674 = vrot.lane.b32.xlu0 %v448, 80
        %v675 = vpop.permute.xlu0 %674
        %v677 = vsel %vm452, %v673, 0
        %v680 = vsel %vm452, %v675, 0
        %682 = vmatprep.subr.bf16.mxu0 0
        %683 = vmatpush1.bf16.xpose.msra.mxu0 %v680
        %684 = vmatprep.subr.bf16.mxu0 0
        %685 = vmatpush1.bf16.xpose.msra.mxu0 0
        %686 = vmatprep.subr.bf16.mxu0 0
        %687 = vmatpush1.bf16.xpose.msra.mxu0 0
        %688 = vmatprep.subr.bf16.mxu0 0
        %689 = vmatpush1.bf16.xpose.msra.mxu0 0
        %690 = vmatprep.subr.bf16.mxu0 0
        %691 = vmatpush1.bf16.xpose.msra.mxu0 0
        %692 = vmatprep.subr.bf16.mxu0 0
        %693 = vmatpush1.bf16.xpose.msra.mxu0 0
        %694 = vmatprep.subr.bf16.mxu0 0
        %695 = vmatpush1.bf16.xpose.msra.mxu0 0
        %696 = vmatprep.subr.bf16.mxu0 0
        %697 = vmatpush1.bf16.xpose.msra.mxu0 0
        %698 = vmatprep.subr.bf16.mxu0 0
        %699 = vmatpush1.bf16.xpose.msra.mxu0 0
        %700 = vmatprep.subr.bf16.mxu0 0
        %701 = vmatpush1.bf16.xpose.msra.mxu0 0
        %702 = vmatprep.subr.bf16.mxu0 0
        %703 = vmatpush1.bf16.xpose.msra.mxu0 0
        %704 = vmatprep.subr.bf16.mxu0 0
        %705 = vmatpush1.bf16.xpose.msra.mxu0 0
        %706 = vmatprep.subr.bf16.mxu0 0
        %707 = vmatpush1.bf16.xpose.msra.mxu0 0
        %708 = vmatprep.subr.bf16.mxu0 0
        %709 = vmatpush1.bf16.xpose.msra.mxu0 0
        %710 = vmatprep.subr.bf16.mxu0 0
        %711 = vmatpush1.bf16.xpose.msra.mxu0 0
        %712 = vmatprep.subr.bf16.mxu0 0
        %713 = vmatpush1.bf16.xpose.msra.mxu0 0
        %714 = vmatprep.mubr.bf16.mxu0 0
        %715 = vmatmul.mubr.bf16.gmra.mrb[0].mxu0 %v677
        %v716 = vpop.f32.mrb[0].mxu0
        %v717 = vadd.f32 0.0, %v716
        %v718 = vpop.f32.mrb[0].mxu0
        %v719 = vpop.f32.mrb[0].mxu0
        %v720 = vpop.f32.mrb[0].mxu0
        %721 = vdwg.mxu0
        %v722 = vsel %vm447, %v717, -1e+30
        %v723 = vsel %vm452, %v722, -inf
        %724 = vmax.xlane.f32.xlu0 %v723
        %v725 = vpop.xlane.xlu0 %724
        %v726 = vsub.f32 %v722, %v725
        %v727 = vmul.f32 %v726, 1.442695
        %v728 = vpow.pop %v727
        %v729 = vsel %vm452, %v728, 0.0
        %730 = vadd.xlane.f32.xlu0 %v729
        %v731 = vpop.xlane.xlu0 %730
        %v732 = vrcp.pop %v731
        %v733 = vmul.f32 %v728, %v732
        %v734 = vpack.c.bf16 %v733, %v733
        %735 = vrot.lane.b32.xlu0 %v448, 48
        %v736 = vpop.permute.xlu0 %735
        %v738 = vsel %vm452, %v734, 0
        %v741 = vsel %vm517, %v736, 0
        %743 = vmatprep.subr.bf16.mxu0 0
        %744 = vmatpush1.bf16.msra.mxu0 %v741
        %745 = vmatprep.subr.bf16.mxu0 0
        %746 = vmatpush1.bf16.msra.mxu0 0
        %747 = vmatprep.subr.bf16.mxu0 0
        %748 = vmatpush1.bf16.msra.mxu0 0
        %749 = vmatprep.subr.bf16.mxu0 0
        %750 = vmatpush1.bf16.msra.mxu0 0
        %751 = vmatprep.subr.bf16.mxu0 0
        %752 = vmatpush1.bf16.msra.mxu0 0
        %753 = vmatprep.subr.bf16.mxu0 0
        %754 = vmatpush1.bf16.msra.mxu0 0
        %755 = vmatprep.subr.bf16.mxu0 0
        %756 = vmatpush1.bf16.msra.mxu0 0
        %757 = vmatprep.subr.bf16.mxu0 0
        %758 = vmatpush1.bf16.msra.mxu0 0
        %759 = vmatprep.subr.bf16.mxu0 0
        %760 = vmatpush1.bf16.msra.mxu0 0
        %761 = vmatprep.subr.bf16.mxu0 0
        %762 = vmatpush1.bf16.msra.mxu0 0
        %763 = vmatprep.subr.bf16.mxu0 0
        %764 = vmatpush1.bf16.msra.mxu0 0
        %765 = vmatprep.subr.bf16.mxu0 0
        %766 = vmatpush1.bf16.msra.mxu0 0
        %767 = vmatprep.subr.bf16.mxu0 0
        %768 = vmatpush1.bf16.msra.mxu0 0
        %769 = vmatprep.subr.bf16.mxu0 0
        %770 = vmatpush1.bf16.msra.mxu0 0
        %771 = vmatprep.subr.bf16.mxu0 0
        %772 = vmatpush1.bf16.msra.mxu0 0
        %773 = vmatprep.subr.bf16.mxu0 0
        %774 = vmatpush1.bf16.msra.mxu0 0
        %775 = vmatprep.mubr.bf16.mxu0 0
        %776 = vmatmul.mubr.bf16.gmra.mrb[0].mxu0 %v738
        %v777 = vpop.f32.mrb[0].mxu0
        %v778 = vadd.f32 0.0, %v777
        %v779 = vpop.f32.mrb[0].mxu0
        %v780 = vpop.f32.mrb[0].mxu0
        %v781 = vpop.f32.mrb[0].mxu0
        %782 = vdwg.mxu0
        %783 = vrot.lane.b32.xlu0 %v448, 104
        %v784 = vpop.permute.xlu0 %783
        %785 = vrot.lane.b32.xlu0 %v448, 72
        %v786 = vpop.permute.xlu0 %785
        %v788 = vsel %vm452, %v784, 0
        %v791 = vsel %vm452, %v786, 0
        %793 = vmatprep.subr.bf16.mxu0 0
        %794 = vmatpush1.bf16.xpose.msra.mxu0 %v791
        %795 = vmatprep.subr.bf16.mxu0 0
        %796 = vmatpush1.bf16.xpose.msra.mxu0 0
        %797 = vmatprep.subr.bf16.mxu0 0
        %798 = vmatpush1.bf16.xpose.msra.mxu0 0
        %799 = vmatprep.subr.bf16.mxu0 0
        %800 = vmatpush1.bf16.xpose.msra.mxu0 0
        %801 = vmatprep.subr.bf16.mxu0 0
        %802 = vmatpush1.bf16.xpose.msra.mxu0 0
        %803 = vmatprep.subr.bf16.mxu0 0
        %804 = vmatpush1.bf16.xpose.msra.mxu0 0
        %805 = vmatprep.subr.bf16.mxu0 0
        %806 = vmatpush1.bf16.xpose.msra.mxu0 0
        %807 = vmatprep.subr.bf16.mxu0 0
        %808 = vmatpush1.bf16.xpose.msra.mxu0 0
        %809 = vmatprep.subr.bf16.mxu0 0
        %810 = vmatpush1.bf16.xpose.msra.mxu0 0
        %811 = vmatprep.subr.bf16.mxu0 0
        %812 = vmatpush1.bf16.xpose.msra.mxu0 0
        %813 = vmatprep.subr.bf16.mxu0 0
        %814 = vmatpush1.bf16.xpose.msra.mxu0 0
        %815 = vmatprep.subr.bf16.mxu0 0
        %816 = vmatpush1.bf16.xpose.msra.mxu0 0
        %817 = vmatprep.subr.bf16.mxu0 0
        %818 = vmatpush1.bf16.xpose.msra.mxu0 0
        %819 = vmatprep.subr.bf16.mxu0 0
        %820 = vmatpush1.bf16.xpose.msra.mxu0 0
        %821 = vmatprep.subr.bf16.mxu0 0
        %822 = vmatpush1.bf16.xpose.msra.mxu0 0
        %823 = vmatprep.subr.bf16.mxu0 0
        %824 = vmatpush1.bf16.xpose.msra.mxu0 0
        %825 = vmatprep.mubr.bf16.mxu0 0
        %826 = vmatmul.mubr.bf16.gmra.mrb[0].mxu0 %v788
        %v827 = vpop.f32.mrb[0].mxu0
        %v828 = vadd.f32 0.0, %v827
        %v829 = vpop.f32.mrb[0].mxu0
        %v830 = vpop.f32.mrb[0].mxu0
        %v831 = vpop.f32.mrb[0].mxu0
        %832 = vdwg.mxu0
        %v833 = vsel %vm447, %v828, -1e+30
        %v834 = vsel %vm452, %v833, -inf
        %835 = vmax.xlane.f32.xlu0 %v834
        %v836 = vpop.xlane.xlu0 %835
        %v837 = vsub.f32 %v833, %v836
        %v838 = vmul.f32 %v837, 1.442695
        %v839 = vpow.pop %v838
        %v840 = vsel %vm452, %v839, 0.0
        %841 = vadd.xlane.f32.xlu0 %v840
        %v842 = vpop.xlane.xlu0 %841
        %v843 = vrcp.pop %v842
        %v844 = vmul.f32 %v839, %v843
        %v845 = vpack.c.bf16 %v844, %v844
        %846 = vrot.lane.b32.xlu0 %v448, 40
        %v847 = vpop.permute.xlu0 %846
        %v849 = vsel %vm452, %v845, 0
        %v852 = vsel %vm517, %v847, 0
        %854 = vmatprep.subr.bf16.mxu0 0
        %855 = vmatpush1.bf16.msra.mxu0 %v852
        %856 = vmatprep.subr.bf16.mxu0 0
        %857 = vmatpush1.bf16.msra.mxu0 0
        %858 = vmatprep.subr.bf16.mxu0 0
        %859 = vmatpush1.bf16.msra.mxu0 0
        %860 = vmatprep.subr.bf16.mxu0 0
        %861 = vmatpush1.bf16.msra.mxu0 0
        %862 = vmatprep.subr.bf16.mxu0 0
        %863 = vmatpush1.bf16.msra.mxu0 0
        %864 = vmatprep.subr.bf16.mxu0 0
        %865 = vmatpush1.bf16.msra.mxu0 0
        %866 = vmatprep.subr.bf16.mxu0 0
        %867 = vmatpush1.bf16.msra.mxu0 0
        %868 = vmatprep.subr.bf16.mxu0 0
        %869 = vmatpush1.bf16.msra.mxu0 0
        %870 = vmatprep.subr.bf16.mxu0 0
        %871 = vmatpush1.bf16.msra.mxu0 0
        %872 = vmatprep.subr.bf16.mxu0 0
        %873 = vmatpush1.bf16.msra.mxu0 0
        %874 = vmatprep.subr.bf16.mxu0 0
        %875 = vmatpush1.bf16.msra.mxu0 0
        %876 = vmatprep.subr.bf16.mxu0 0
        %877 = vmatpush1.bf16.msra.mxu0 0
        %878 = vmatprep.subr.bf16.mxu0 0
        %879 = vmatpush1.bf16.msra.mxu0 0
        %880 = vmatprep.subr.bf16.mxu0 0
        %881 = vmatpush1.bf16.msra.mxu0 0
        %882 = vmatprep.subr.bf16.mxu0 0
        %883 = vmatpush1.bf16.msra.mxu0 0
        %884 = vmatprep.subr.bf16.mxu0 0
        %885 = vmatpush1.bf16.msra.mxu0 0
        %886 = vmatprep.mubr.bf16.mxu0 0
        %887 = vmatmul.mubr.bf16.gmra.mrb[0].mxu0 %v849
        %v888 = vpop.f32.mrb[0].mxu0
        %v889 = vadd.f32 0.0, %v888
        %v890 = vpop.f32.mrb[0].mxu0
        %v891 = vpop.f32.mrb[0].mxu0
        %v892 = vpop.f32.mrb[0].mxu0
        %893 = vdwg.mxu0
        %895 = vrot.lane.b32.xlu0 %v667, 8
        %v896 = vpop.permute.xlu0 %895
        %899 = vrot.lane.b32.xlu0 %v778, 16
        %v900 = vpop.permute.xlu0 %899
        %903 = vrot.lane.b32.xlu0 %v889, 24
        %v904 = vpop.permute.xlu0 %903
        %v906 = vsel %vm452, %v556, %v896
        %vm907 = vcmask 130048
        %v908 = vsel %vm907, %v906, %v900
        %vm909 = vcmask 195584
        %v910 = vsel %vm909, %v908, %v904
        %v911 = vpack.c.bf16 %v910, %v910
        %v912 = vld [vmem:[#allocation8] sm:$0xf]
        %v913 = vld [vmem:[#allocation8 + $0x4] sm:$0xf]
        %v914 = vld [vmem:[#allocation8 + $0x8] sm:$0xf]
        %v915 = vld [vmem:[#allocation8 + $0xc] sm:$0xf]
        %v916 = vld [vmem:[#allocation10] sm:$0x1]
        %v918 = vlaneseq
        %v919 = vshrl.u32 %v918, 7
        %v920 = vsub.s32 0, %v919
        %v921 = vrot.slane %v916, %v920
        %v927 = vunpack.c.l.b16 %v912
        %v928 = vunpack.c.l.b16 %v913
        %v929 = vunpack.c.l.b16 %v914
        %v930 = vunpack.c.l.b16 %v915
        %v931 = vpack.c.b16 %v928, %v927
        %v932 = vpack.c.b16 %v930, %v929
        %v936 = vsel %vm399, %v911, 0
        %938 = vmatprep.subr.bf16.mxu0 0
        %939 = vmatpush1.bf16.msra.mxu0 %v931
        %940 = vmatprep.subr.bf16.mxu0 0
        %941 = vmatpush1.bf16.msra.mxu0 %v932
        %942 = vmatprep.subr.bf16.mxu0 0
        %943 = vmatpush1.bf16.msra.mxu0 0
        %944 = vmatprep.subr.bf16.mxu0 0
        %945 = vmatpush1.bf16.msra.mxu0 0
        %946 = vmatprep.subr.bf16.mxu0 0
        %947 = vmatpush1.bf16.msra.mxu0 0
        %948 = vmatprep.subr.bf16.mxu0 0
        %949 = vmatpush1.bf16.msra.mxu0 0
        %950 = vmatprep.subr.bf16.mxu0 0
        %951 = vmatpush1.bf16.msra.mxu0 0
        %952 = vmatprep.subr.bf16.mxu0 0
        %953 = vmatpush1.bf16.msra.mxu0 0
        %954 = vmatprep.subr.bf16.mxu0 0
        %955 = vmatpush1.bf16.msra.mxu0 0
        %956 = vmatprep.subr.bf16.mxu0 0
        %957 = vmatpush1.bf16.msra.mxu0 0
        %958 = vmatprep.subr.bf16.mxu0 0
        %959 = vmatpush1.bf16.msra.mxu0 0
        %960 = vmatprep.subr.bf16.mxu0 0
        %961 = vmatpush1.bf16.msra.mxu0 0
        %962 = vmatprep.subr.bf16.mxu0 0
        %963 = vmatpush1.bf16.msra.mxu0 0
        %964 = vmatprep.subr.bf16.mxu0 0
        %965 = vmatpush1.bf16.msra.mxu0 0
        %966 = vmatprep.subr.bf16.mxu0 0
        %967 = vmatpush1.bf16.msra.mxu0 0
        %968 = vmatprep.subr.bf16.mxu0 0
        %969 = vmatpush1.bf16.msra.mxu0 0
        %970 = vmatprep.mubr.bf16.mxu0 0
        %971 = vmatmul.mubr.bf16.gmra.mrb[0].mxu0 %v936
        %v972 = vpop.f32.mrb[0].mxu0
        %v973 = vadd.f32 %v921, %v972
        %v974 = vpop.f32.mrb[0].mxu0
        %v975 = vpop.f32.mrb[0].mxu0
        %v976 = vpop.f32.mrb[0].mxu0
        %977 = vdwg.mxu0
        %v978 = vadd.f32 %v375, %v973
        %v979 = vld [vmem:[#allocation11] sm:$0x1]
        %v980 = vld [vmem:[#allocation13] sm:$0x1]
        %v981 = vsel %vm399, %v978, 0.0
        %982 = vadd.xlane.f32.xlu0 %v981
        %v983 = vpop.xlane.xlu0 %982
        %v984 = vrcp.pop 32.0
        %v985 = vmul.f32 %v983, %v984
        %v986 = vsub.f32 %v978, %v985
        %v987 = vmul.f32 %v986, %v986
        %v988 = vsel %vm399, %v987, 0.0
        %989 = vadd.xlane.f32.xlu0 %v988
        %v990 = vpop.xlane.xlu0 %989
        %v991 = vmul.f32 %v990, %v984
        %v992 = vadd.f32 %v991, 1e-05
        %v993 = vrsqrt.pop %v992
        %v994 = vmul.f32 %v986, %v993
        %v996 = vlaneseq
        %v997 = vshrl.u32 %v996, 7
        %v998 = vsub.s32 0, %v997
        %v999 = vrot.slane %v979, %v998
        %v1001 = vmul.f32 %v994, %v999
        %v1003 = vlaneseq
        %v1004 = vshrl.u32 %v1003, 7
        %v1005 = vsub.s32 0, %v1004
        %v1006 = vrot.slane %v980, %v1005
        %v1008 = vadd.f32 %v1001, %v1006
        %v1009 = vpack.c.bf16 %v1008, %v1008
        %vm1010 = vcmask 257024
        %1011 = vst.msk [vmem:[%s372] sm:$0xf] %vm1010, %v1009
        %s1012 = sand.u32 %s187, 1
        %s1013 = scalar_lea.sflag [#allocation4], %s1012
        %s1014 = sand.u32 %s187, 1
        %s1015 = smul.addr %s1014, 4
        %s1016 = scalar_lea.vmem [#allocation14], %s1015
        // Predicated region
        $region77: #{_lambda_.5} parent=47 // pred_check
          %p1017 = pneg %p197
        $region78: #{_lambda_.5} parent=47 // pred_check_branch
          %1019 = sbr.rel (%p1017) target = $region80
        $region79: #{_lambda_.5} parent=47 // pred_region
          %s1021 = ssub.s32 64, 64
          %1022 = vsyncadd %s1013, %s1021
          %s1023 = smul.addr %s27, 64
          %s1024 = scalar_lea.hbm %s7, %s1023
          %s1026 = sshll.u32 %s1016, 4
          %s1027 = int_to_ptr.vmem [resolvable:$true] %s1026
          %1029 = dma.vmem_to_hbm [thread:$0]  %s1027, 64, %s1024, %s1013
        $region80: #{_lambda_.5} parent=47 // pred_fallthru
          _
      $region48: #{_lambda_.5} parent=5 // pred_fallthru
        _
      %p1030 = scmp.le.s32.totalorder 2, %s22
      // Predicated region
      $region81: #{_lambda_.5} parent=5 // pred_check
        %p1031 = pneg %p1030
      $region82: #{_lambda_.5} parent=5 // pred_check_branch
        %1033 = sbr.rel (%p1031) target = $region84
      $region83: #{_lambda_.5} parent=5 // pred_region
        %s1034 = ssub.s32 %s22, 2
        // Predicated region
        $region85: #{_lambda_.5} parent=83 // pred_check
          %p1035 = pneg %p203
        $region86: #{_lambda_.5} parent=83 // pred_check_branch
          %1037 = sbr.rel (%p1035) target = $region88
        $region87: #{_lambda_.5} parent=83 // pred_region
          %s1038 = sand.u32 %s188, 1
          %s1039 = scalar_lea.sflag [#allocation4], %s1038
          %s1040 = sand.u32 %s188, 1
          %s1041 = smul.addr %s1040, 4
          %s1042 = scalar_lea.vmem [#allocation14], %s1041
          %1043 = dma.done %s1039, 64
        $region88: #{_lambda_.5} parent=83 // pred_fallthru
          _
      $region84: #{_lambda_.5} parent=5 // pred_fallthru
        _
    $region6: #{_lambda_.5} parent=1 // loop_footer
      %s26 = sadd.s32 1, %s22
    $region7: #{_lambda_.5} parent=1 // loop_footer_branch
      %21 = sbr.rel target = $region3
    $region8: #{_lambda_.5} parent=1 // loop_exit
      _
    %1044 = vsyncpa [#allocation3], 1
    %s1045 = scalar_lea.sflag [#allocation3], 1
    %1046 = vsyncpa %s1045, 1
    %1047 = vsyncpa [#allocation6], 1
    %1048 = vsyncpa [#allocation9], 1
    %1049 = vsyncpa [#allocation12], 1
    %1050 = vsyncpa [#allocation4], 1
    %s1051 = scalar_lea.sflag [#allocation4], 1
    %1052 = vsyncpa %s1051, 1

</llo_original>
